<compile_context>
chip_gen: v7x
topology: tpu7x:2x2x1
jax: 0.10.0
libtpu: 0.0.40
codegen_flags: <defaults>
</compile_context>

<pallas_src>
import functools

import jax
import jax.numpy as jnp
from jax.experimental import pallas as pl
from jax.experimental.pallas import tpu as pltpu


# --------------------------------------------------------------------------
# Pallas kernel: fused patch-extraction + bf16 matmul + per-channel affine
# --------------------------------------------------------------------------
def _conv_affine_kernel(x_ref, w_ref, s_ref, b_ref, o_ref, *,
                        kh, kw, stride, dilation, tile_oh, ow):
    # x_ref : (1, H_tot, W_tot, CIN)       padded NHWC image (one batch elem)
    # w_ref : (KH, KW, CIN, TILE_COUT)     bf16 HWIO weight tile
    # s_ref : (1, TILE_COUT)               per-channel output scale
    # b_ref : (1, TILE_COUT)               per-channel output bias
    # o_ref : (1, TILE_OH, OW, TILE_COUT)  output tile (NHWC)
    oh_idx = pl.program_id(2)
    cin = x_ref.shape[-1]
    tile_cout = o_ref.shape[-1]
    row_span = (tile_oh - 1) * stride + 1
    col_span = (ow - 1) * stride + 1

    acc = jnp.zeros((tile_oh * ow, tile_cout), jnp.float32)
    for dh in range(kh):
        row0 = oh_idx * (tile_oh * stride) + dh * dilation
        rows = x_ref[0, pl.ds(row0, row_span), :, :]      # (row_span, W_tot, CIN)
        if stride > 1:
            rows = rows[::stride]                         # (tile_oh, W_tot, CIN)
        for dw in range(kw):
            cols = rows[:, dw * dilation: dw * dilation + col_span, :]
            if stride > 1:
                cols = cols[:, ::stride, :]               # (tile_oh, OW, CIN)
            lhs = cols.reshape(tile_oh * ow, cin)         # VMEM-local, no HBM
            acc = acc + jnp.dot(lhs, w_ref[dh, dw],
                                preferred_element_type=jnp.float32)

    out = acc * s_ref[...] + b_ref[...]                   # per-channel affine
    o_ref[...] = out.reshape(1, tile_oh, ow, tile_cout).astype(o_ref.dtype)


# --------------------------------------------------------------------------
# Fold the per-bit integer rescale branches into per-channel (scale, bias)
# --------------------------------------------------------------------------
def _fold_output_affine(cout, wbits, alpha_weight, alpha, b_8, n_b, n_sh, b_16):
    sel = jnp.argmax(alpha_weight, axis=0)                 # (COUT,) bit index
    scale = jnp.zeros((cout,), jnp.float32)
    bias = jnp.zeros((cout,), jnp.float32)
    for i, bit in enumerate(wbits):
        m = (sel == i).astype(jnp.float32)
        if bit == 2:
            shift = 2.0 ** jnp.reshape(n_sh[bit], (-1,)).astype(jnp.float32)
            a = jnp.reshape(alpha[bit], (-1,)).astype(jnp.float32)
            b = (jnp.reshape(b_8[bit], (-1,)).astype(jnp.float32)
                 * 2.0 ** jnp.reshape(n_b[bit], (-1,)).astype(jnp.float32))
            scale = scale + m * (a / shift)
            bias = bias + m * (b / shift)
        elif bit == 8:
            shift = 2.0 ** jnp.reshape(n_sh[bit], (-1,)).astype(jnp.float32)
            a = jnp.reshape(alpha[bit], (-1,)).astype(jnp.float32)
            scale = scale + m * (a / shift)
            if b_16.get(bit, None) is not None:
                b16 = jnp.reshape(b_16[bit], (-1,)).astype(jnp.float32)
                bias = bias + m * (a * b16 / shift)
        # Other bit-widths have no integer branch in the reference module, so
        # channels selecting them contribute zero (scale = bias = 0).
    return scale, bias


# --------------------------------------------------------------------------
# Pallas-backed conv + per-channel affine
# --------------------------------------------------------------------------
def int_multiprec_conv2d(x, weight, out_scale, out_bias, *,
                         stride=1, padding=1, dilation=1, groups=1,
                         tile_oh=None, tile_cout=128,
                         compute_dtype=jnp.bfloat16):
    """y[n,c] = out_scale[c] * conv2d(x, weight)[n,c] + out_bias[c] (NCHW)."""
    if groups != 1:
        # TODO(synk): grouped convolution (conv.groups > 1) not implemented.
        raise NotImplementedError("groups != 1 is not supported")
    n, cin, h, w = x.shape
    cout, _, kh, kw = weight.shape
    oh = (h + 2 * padding - dilation * (kh - 1) - 1) // stride + 1
    ow = (w + 2 * padding - dilation * (kw - 1) - 1) // stride + 1

    if tile_oh is None:                      # aim for M tile ~256 rows
        tile_oh = max(1, min(oh, max(1, 256 // max(ow, 1))))
    tile_oh = min(tile_oh, oh)
    n_oh_tiles = pl.cdiv(oh, tile_oh)
    oh_pad = n_oh_tiles * tile_oh

    cout_pad = pl.cdiv(cout, tile_cout) * tile_cout
    n_cout_tiles = cout_pad // tile_cout

    # NCHW -> NHWC, spatial zero-pad (+ bottom rows so a ragged last OH tile
    # never reads out of bounds), cast to the bf16 MXU dtype.  This is a 1x
    # copy of the input; no KH*KW-inflated im2col matrix is ever built.
    x_nhwc = jnp.transpose(x, (0, 2, 3, 1))
    extra_rows = (oh_pad - oh) * stride
    x_pad = jnp.pad(x_nhwc, ((0, 0),
                             (padding, padding + extra_rows),
                             (padding, padding),
                             (0, 0))).astype(compute_dtype)
    h_tot = h + 2 * padding + extra_rows
    w_tot = w + 2 * padding
    # TODO(synk): for very large feature maps the whole padded image may not
    # fit VMEM; that case needs a manual halo-row DMA (memory_space=pl.ANY).

    # OIHW -> HWIO, pad COUT to a lane-dense multiple of tile_cout, cast bf16.
    w_hwio = jnp.transpose(weight, (2, 3, 1, 0))
    w_hwio = jnp.pad(w_hwio, ((0, 0), (0, 0), (0, 0), (0, cout_pad - cout)))
    w_hwio = w_hwio.astype(compute_dtype)

    scale_p = jnp.pad(out_scale.astype(jnp.float32),
                      (0, cout_pad - cout)).reshape(1, cout_pad)
    bias_p = jnp.pad(out_bias.astype(jnp.float32),
                     (0, cout_pad - cout)).reshape(1, cout_pad)

    kern = functools.partial(_conv_affine_kernel, kh=kh, kw=kw, stride=stride,
                             dilation=dilation, tile_oh=tile_oh, ow=ow)

    out_nhwc = pl.pallas_call(
        kern,
        out_shape=jax.ShapeDtypeStruct((n, oh_pad, ow, cout_pad), jnp.float32),
        grid=(n, n_cout_tiles, n_oh_tiles),
        in_specs=[
            # whole padded image of one batch element stays resident in VMEM
            pl.BlockSpec((1, h_tot, w_tot, cin), lambda b, j, i: (b, 0, 0, 0)),
            pl.BlockSpec((kh, kw, cin, tile_cout), lambda b, j, i: (0, 0, 0, j)),
            pl.BlockSpec((1, tile_cout), lambda b, j, i: (0, j)),
            pl.BlockSpec((1, tile_cout), lambda b, j, i: (0, j)),
        ],
        out_specs=pl.BlockSpec((1, tile_oh, ow, tile_cout),
                               lambda b, j, i: (b, i, 0, j)),
        compiler_params=pltpu.CompilerParams(
            dimension_semantics=("parallel", "parallel", "parallel")),
    )(x_pad, w_hwio, scale_p, bias_p)

    out = out_nhwc[:, :oh, :, :cout]
    return jnp.transpose(out, (0, 3, 1, 2))          # back to NCHW (module parity)


def int_multiprec_conv2d_forward(x, weight, alpha_weight, int_params, *,
                                 wbits, stride=1, padding=1, dilation=1,
                                 groups=1, tile_oh=None, tile_cout=128):
    cout = weight.shape[0]
    scale, bias = _fold_output_affine(
        cout, wbits, alpha_weight,
        int_params['alpha'], int_params['b_8'], int_params['n_b'],
        int_params['n_sh'], int_params['b_16'])
    return int_multiprec_conv2d(x, weight, scale, bias,
                                stride=stride, padding=padding,
                                dilation=dilation, groups=groups,
                                tile_oh=tile_oh, tile_cout=tile_cout)


# --------------------------------------------------------------------------
# Pure-JAX literal reference (mirrors the PyTorch forward, per-bit branches)
# --------------------------------------------------------------------------
def _reference_forward(x, weight, alpha_weight, int_params, wbits,
                       stride, padding, dilation):
    alpha, b_8 = int_params['alpha'], int_params['b_8']
    n_b, n_sh, b_16 = int_params['n_b'], int_params['n_sh'], int_params['b_16']
    sel = jnp.argmax(alpha_weight, axis=0)
    sw = jax.nn.one_hot(sel, len(wbits), dtype=x.dtype).T       # (nbits, COUT)

    def conv(inp, wgt, bia):
        out = jax.lax.conv_general_dilated(
            inp, wgt, (stride, stride),
            [(padding, padding), (padding, padding)],
            rhs_dilation=(dilation, dilation),
            dimension_numbers=("NCHW", "OIHW", "NCHW"))
        if bia is not None:
            out = out + bia[None, :, None, None]
        return out

    total = jnp.zeros_like(
        conv(x, weight, None))
    for i, bit in enumerate(wbits):
        eff_w = weight * sw[i][:, None, None, None]
        if bit == 2:
            conv_out = conv(x, eff_w, None)
            a = jnp.reshape(alpha[bit], (-1,))[None, :, None, None]
            b = (jnp.reshape(b_8[bit], (-1,))
                 * 2.0 ** jnp.reshape(n_b[bit], (-1,)))[None, :, None, None]
            shift = (2.0 ** jnp.reshape(n_sh[bit], (-1,)))[None, :, None, None]
            total = total + ((a * conv_out + b) / shift) * sw[i][None, :, None, None]
        elif bit == 8:
            if b_16.get(bit, None) is not None:
                eff_b = jnp.reshape(b_16[bit], (-1,)) * sw[i]
            else:
                eff_b = None
            conv_out = conv(x, eff_w, eff_b)
            a = jnp.reshape(alpha[bit], (-1,))[None, :, None, None]
            shift = (2.0 ** jnp.reshape(n_sh[bit], (-1,)))[None, :, None, None]
            total = total + (a * conv_out / shift) * sw[i][None, :, None, None]
    return total


if __name__ == "__main__":
    key = jax.random.PRNGKey(0)
    N, CIN, H, W = 2, 4, 16, 16
    COUT, KH, KW = 8, 3, 3
    stride, padding, dilation = 1, 1, 1
    wbits = (2, 4, 8)

    ks = jax.random.split(key, 8)
    # Integer-valued tensors (this is the integer-deployment module), so the
    # bf16 MXU fast path is exact.
    x = jnp.round(jax.random.normal(ks[0], (N, CIN, H, W)) * 4.0).astype(jnp.float32)
    weight = jnp.round(jax.random.normal(ks[1], (COUT, CIN, KH, KW)) * 3.0).astype(jnp.float32)

    # Module __init__ fills alpha_weight with 0.01; randomize so channels pick
    # a mixture of 2/4/8-bit branches for better coverage.
    alpha_weight = jax.random.uniform(ks[2], (len(wbits), COUT), jnp.float32)

    int_params = {
        'alpha': {2: jax.random.uniform(ks[3], (COUT,), jnp.float32, 0.5, 1.5),
                  8: jax.random.uniform(ks[4], (COUT,), jnp.float32, 0.5, 1.5)},
        'b_8':   {2: jnp.round(jax.random.normal(ks[5], (COUT,)) * 8.0).astype(jnp.float32)},
        'n_b':   {2: jnp.full((COUT,), 2.0, jnp.float32)},
        'n_sh':  {2: jnp.full((COUT,), 5.0, jnp.float32),
                  8: jnp.full((COUT,), 7.0, jnp.float32)},
        'b_16':  {8: jnp.round(jax.random.normal(ks[6], (COUT,)) * 16.0).astype(jnp.float32)},
    }

    fwd = jax.jit(functools.partial(
        int_multiprec_conv2d_forward, wbits=wbits, stride=stride,
        padding=padding, dilation=dilation, tile_oh=8, tile_cout=128))

    out = jax.block_until_ready(fwd(x, weight, alpha_weight, int_params))

    ref = _reference_forward(x, weight, alpha_weight, int_params, wbits,
                             stride, padding, dilation)

    assert out.shape == (N, COUT, H, W), out.shape
    err = float(jnp.max(jnp.abs(out - ref)))
    assert jnp.allclose(out, ref, atol=1e-3, rtol=1e-4), err
    print("KERNEL_OK")
</pallas_src>

<mosaic_0001>
module attributes {stable_mosaic.version = 11 : i64} {
  func.func @_conv_affine_kernel(%arg0: i32, %arg1: i32, %arg2: i32, %arg3: memref<1x18x18x4xbf16, #tpu.memory_space<vmem>>, %arg4: memref<3x3x4x128xbf16, #tpu.memory_space<vmem>>, %arg5: memref<1x128xf32, #tpu.memory_space<vmem>>, %arg6: memref<1x128xf32, #tpu.memory_space<vmem>>, %arg7: memref<1x8x16x128xf32, #tpu.memory_space<vmem>>) attributes {dimension_semantics = [#tpu.dimension_semantics<parallel>, #tpu.dimension_semantics<parallel>, #tpu.dimension_semantics<parallel>], iteration_bounds = array<i64: 2, 1, 2>, scalar_prefetch = 0 : i64, scratch_operands = 0 : i64, tpu.core_type = #tpu.core_type<tc>, window_params = [{transform_indices = @transform_0, window_bounds = array<i64: 1, 18, 18, 4>}, {transform_indices = @transform_1, window_bounds = array<i64: 3, 3, 4, 128>}, {transform_indices = @transform_2, window_bounds = array<i64: 1, 128>}, {transform_indices = @transform_3, window_bounds = array<i64: 1, 128>}, {transform_indices = @transform_4, window_bounds = array<i64: 1, 8, 16, 128>}]} {
    %cst = arith.constant 0.000000e+00 : f32
    %0 = vector.broadcast %cst : f32 to vector<128x128xf32>
    %c8_i32 = arith.constant 8 : i32
    %1 = arith.muli %arg2, %c8_i32 : i32
    %c0_i32 = arith.constant 0 : i32
    %2 = arith.addi %1, %c0_i32 : i32
    %c0 = arith.constant 0 : index
    %3 = arith.index_cast %2 : i32 to index
    %c0_0 = arith.constant 0 : index
    %c0_1 = arith.constant 0 : index
    %4 = vector.load %arg3[%c0, %3, %c0_0, %c0_1] : memref<1x18x18x4xbf16, #tpu.memory_space<vmem>>, vector<1x8x18x4xbf16>
    %5 = vector.shape_cast %4 : vector<1x8x18x4xbf16> to vector<8x18x4xbf16>
    %6 = vector.extract_strided_slice %5 {offsets = [0, 0, 0], sizes = [8, 16, 4], strides = [1, 1, 1]} : vector<8x18x4xbf16> to vector<8x16x4xbf16>
    %7 = vector.shape_cast %6 : vector<8x16x4xbf16> to vector<128x4xbf16>
    %c0_2 = arith.constant 0 : index
    %c0_3 = arith.constant 0 : index
    %c0_4 = arith.constant 0 : index
    %c0_5 = arith.constant 0 : index
    %8 = vector.load %arg4[%c0_2, %c0_3, %c0_4, %c0_5] : memref<3x3x4x128xbf16, #tpu.memory_space<vmem>>, vector<1x1x4x128xbf16>
    %9 = vector.shape_cast %8 : vector<1x1x4x128xbf16> to vector<4x128xbf16>
    %cst_6 = arith.constant dense<0.000000e+00> : vector<128x128xf32>
    %10 = tpu.matmul %7, %9, %cst_6 {dimension_numbers = #tpu.dot_dimension_numbers<[1], [0], [0], [1], [0, 0, 1, 1], [], []>} : vector<128x4xbf16>, vector<4x128xbf16>, vector<128x128xf32> -> vector<128x128xf32>
    %11 = arith.addf %0, %10 : vector<128x128xf32>
    %12 = vector.extract_strided_slice %5 {offsets = [0, 1, 0], sizes = [8, 16, 4], strides = [1, 1, 1]} : vector<8x18x4xbf16> to vector<8x16x4xbf16>
    %13 = vector.shape_cast %12 : vector<8x16x4xbf16> to vector<128x4xbf16>
    %c0_7 = arith.constant 0 : index
    %c1 = arith.constant 1 : index
    %c0_8 = arith.constant 0 : index
    %c0_9 = arith.constant 0 : index
    %14 = vector.load %arg4[%c0_7, %c1, %c0_8, %c0_9] : memref<3x3x4x128xbf16, #tpu.memory_space<vmem>>, vector<1x1x4x128xbf16>
    %15 = vector.shape_cast %14 : vector<1x1x4x128xbf16> to vector<4x128xbf16>
    %cst_10 = arith.constant dense<0.000000e+00> : vector<128x128xf32>
    %16 = tpu.matmul %13, %15, %cst_10 {dimension_numbers = #tpu.dot_dimension_numbers<[1], [0], [0], [1], [0, 0, 1, 1], [], []>} : vector<128x4xbf16>, vector<4x128xbf16>, vector<128x128xf32> -> vector<128x128xf32>
    %17 = arith.addf %11, %16 : vector<128x128xf32>
    %18 = vector.extract_strided_slice %5 {offsets = [0, 2, 0], sizes = [8, 16, 4], strides = [1, 1, 1]} : vector<8x18x4xbf16> to vector<8x16x4xbf16>
    %19 = vector.shape_cast %18 : vector<8x16x4xbf16> to vector<128x4xbf16>
    %c0_11 = arith.constant 0 : index
    %c2 = arith.constant 2 : index
    %c0_12 = arith.constant 0 : index
    %c0_13 = arith.constant 0 : index
    %20 = vector.load %arg4[%c0_11, %c2, %c0_12, %c0_13] : memref<3x3x4x128xbf16, #tpu.memory_space<vmem>>, vector<1x1x4x128xbf16>
    %21 = vector.shape_cast %20 : vector<1x1x4x128xbf16> to vector<4x128xbf16>
    %cst_14 = arith.constant dense<0.000000e+00> : vector<128x128xf32>
    %22 = tpu.matmul %19, %21, %cst_14 {dimension_numbers = #tpu.dot_dimension_numbers<[1], [0], [0], [1], [0, 0, 1, 1], [], []>} : vector<128x4xbf16>, vector<4x128xbf16>, vector<128x128xf32> -> vector<128x128xf32>
    %23 = arith.addf %17, %22 : vector<128x128xf32>
    %c8_i32_15 = arith.constant 8 : i32
    %24 = arith.muli %arg2, %c8_i32_15 : i32
    %c1_i32 = arith.constant 1 : i32
    %25 = arith.addi %24, %c1_i32 : i32
    %c0_16 = arith.constant 0 : index
    %26 = arith.index_cast %25 : i32 to index
    %c0_17 = arith.constant 0 : index
    %c0_18 = arith.constant 0 : index
    %27 = vector.load %arg3[%c0_16, %26, %c0_17, %c0_18] : memref<1x18x18x4xbf16, #tpu.memory_space<vmem>>, vector<1x8x18x4xbf16>
    %28 = vector.shape_cast %27 : vector<1x8x18x4xbf16> to vector<8x18x4xbf16>
    %29 = vector.extract_strided_slice %28 {offsets = [0, 0, 0], sizes = [8, 16, 4], strides = [1, 1, 1]} : vector<8x18x4xbf16> to vector<8x16x4xbf16>
    %30 = vector.shape_cast %29 : vector<8x16x4xbf16> to vector<128x4xbf16>
    %c1_19 = arith.constant 1 : index
    %c0_20 = arith.constant 0 : index
    %c0_21 = arith.constant 0 : index
    %c0_22 = arith.constant 0 : index
    %31 = vector.load %arg4[%c1_19, %c0_20, %c0_21, %c0_22] : memref<3x3x4x128xbf16, #tpu.memory_space<vmem>>, vector<1x1x4x128xbf16>
    %32 = vector.shape_cast %31 : vector<1x1x4x128xbf16> to vector<4x128xbf16>
    %cst_23 = arith.constant dense<0.000000e+00> : vector<128x128xf32>
    %33 = tpu.matmul %30, %32, %cst_23 {dimension_numbers = #tpu.dot_dimension_numbers<[1], [0], [0], [1], [0, 0, 1, 1], [], []>} : vector<128x4xbf16>, vector<4x128xbf16>, vector<128x128xf32> -> vector<128x128xf32>
    %34 = arith.addf %23, %33 : vector<128x128xf32>
    %35 = vector.extract_strided_slice %28 {offsets = [0, 1, 0], sizes = [8, 16, 4], strides = [1, 1, 1]} : vector<8x18x4xbf16> to vector<8x16x4xbf16>
    %36 = vector.shape_cast %35 : vector<8x16x4xbf16> to vector<128x4xbf16>
    %c1_24 = arith.constant 1 : index
    %c1_25 = arith.constant 1 : index
    %c0_26 = arith.constant 0 : index
    %c0_27 = arith.constant 0 : index
    %37 = vector.load %arg4[%c1_24, %c1_25, %c0_26, %c0_27] : memref<3x3x4x128xbf16, #tpu.memory_space<vmem>>, vector<1x1x4x128xbf16>
    %38 = vector.shape_cast %37 : vector<1x1x4x128xbf16> to vector<4x128xbf16>
    %cst_28 = arith.constant dense<0.000000e+00> : vector<128x128xf32>
    %39 = tpu.matmul %36, %38, %cst_28 {dimension_numbers = #tpu.dot_dimension_numbers<[1], [0], [0], [1], [0, 0, 1, 1], [], []>} : vector<128x4xbf16>, vector<4x128xbf16>, vector<128x128xf32> -> vector<128x128xf32>
    %40 = arith.addf %34, %39 : vector<128x128xf32>
    %41 = vector.extract_strided_slice %28 {offsets = [0, 2, 0], sizes = [8, 16, 4], strides = [1, 1, 1]} : vector<8x18x4xbf16> to vector<8x16x4xbf16>
    %42 = vector.shape_cast %41 : vector<8x16x4xbf16> to vector<128x4xbf16>
    %c1_29 = arith.constant 1 : index
    %c2_30 = arith.constant 2 : index
    %c0_31 = arith.constant 0 : index
    %c0_32 = arith.constant 0 : index
    %43 = vector.load %arg4[%c1_29, %c2_30, %c0_31, %c0_32] : memref<3x3x4x128xbf16, #tpu.memory_space<vmem>>, vector<1x1x4x128xbf16>
    %44 = vector.shape_cast %43 : vector<1x1x4x128xbf16> to vector<4x128xbf16>
    %cst_33 = arith.constant dense<0.000000e+00> : vector<128x128xf32>
    %45 = tpu.matmul %42, %44, %cst_33 {dimension_numbers = #tpu.dot_dimension_numbers<[1], [0], [0], [1], [0, 0, 1, 1], [], []>} : vector<128x4xbf16>, vector<4x128xbf16>, vector<128x128xf32> -> vector<128x128xf32>
    %46 = arith.addf %40, %45 : vector<128x128xf32>
    %c8_i32_34 = arith.constant 8 : i32
    %47 = arith.muli %arg2, %c8_i32_34 : i32
    %c2_i32 = arith.constant 2 : i32
    %48 = arith.addi %47, %c2_i32 : i32
    %c0_35 = arith.constant 0 : index
    %49 = arith.index_cast %48 : i32 to index
    %c0_36 = arith.constant 0 : index
    %c0_37 = arith.constant 0 : index
    %50 = vector.load %arg3[%c0_35, %49, %c0_36, %c0_37] : memref<1x18x18x4xbf16, #tpu.memory_space<vmem>>, vector<1x8x18x4xbf16>
    %51 = vector.shape_cast %50 : vector<1x8x18x4xbf16> to vector<8x18x4xbf16>
    %52 = vector.extract_strided_slice %51 {offsets = [0, 0, 0], sizes = [8, 16, 4], strides = [1, 1, 1]} : vector<8x18x4xbf16> to vector<8x16x4xbf16>
    %53 = vector.shape_cast %52 : vector<8x16x4xbf16> to vector<128x4xbf16>
    %c2_38 = arith.constant 2 : index
    %c0_39 = arith.constant 0 : index
    %c0_40 = arith.constant 0 : index
    %c0_41 = arith.constant 0 : index
    %54 = vector.load %arg4[%c2_38, %c0_39, %c0_40, %c0_41] : memref<3x3x4x128xbf16, #tpu.memory_space<vmem>>, vector<1x1x4x128xbf16>
    %55 = vector.shape_cast %54 : vector<1x1x4x128xbf16> to vector<4x128xbf16>
    %cst_42 = arith.constant dense<0.000000e+00> : vector<128x128xf32>
    %56 = tpu.matmul %53, %55, %cst_42 {dimension_numbers = #tpu.dot_dimension_numbers<[1], [0], [0], [1], [0, 0, 1, 1], [], []>} : vector<128x4xbf16>, vector<4x128xbf16>, vector<128x128xf32> -> vector<128x128xf32>
    %57 = arith.addf %46, %56 : vector<128x128xf32>
    %58 = vector.extract_strided_slice %51 {offsets = [0, 1, 0], sizes = [8, 16, 4], strides = [1, 1, 1]} : vector<8x18x4xbf16> to vector<8x16x4xbf16>
    %59 = vector.shape_cast %58 : vector<8x16x4xbf16> to vector<128x4xbf16>
    %c2_43 = arith.constant 2 : index
    %c1_44 = arith.constant 1 : index
    %c0_45 = arith.constant 0 : index
    %c0_46 = arith.constant 0 : index
    %60 = vector.load %arg4[%c2_43, %c1_44, %c0_45, %c0_46] : memref<3x3x4x128xbf16, #tpu.memory_space<vmem>>, vector<1x1x4x128xbf16>
    %61 = vector.shape_cast %60 : vector<1x1x4x128xbf16> to vector<4x128xbf16>
    %cst_47 = arith.constant dense<0.000000e+00> : vector<128x128xf32>
    %62 = tpu.matmul %59, %61, %cst_47 {dimension_numbers = #tpu.dot_dimension_numbers<[1], [0], [0], [1], [0, 0, 1, 1], [], []>} : vector<128x4xbf16>, vector<4x128xbf16>, vector<128x128xf32> -> vector<128x128xf32>
    %63 = arith.addf %57, %62 : vector<128x128xf32>
    %64 = vector.extract_strided_slice %51 {offsets = [0, 2, 0], sizes = [8, 16, 4], strides = [1, 1, 1]} : vector<8x18x4xbf16> to vector<8x16x4xbf16>
    %65 = vector.shape_cast %64 : vector<8x16x4xbf16> to vector<128x4xbf16>
    %c2_48 = arith.constant 2 : index
    %c2_49 = arith.constant 2 : index
    %c0_50 = arith.constant 0 : index
    %c0_51 = arith.constant 0 : index
    %66 = vector.load %arg4[%c2_48, %c2_49, %c0_50, %c0_51] : memref<3x3x4x128xbf16, #tpu.memory_space<vmem>>, vector<1x1x4x128xbf16>
    %67 = vector.shape_cast %66 : vector<1x1x4x128xbf16> to vector<4x128xbf16>
    %cst_52 = arith.constant dense<0.000000e+00> : vector<128x128xf32>
    %68 = tpu.matmul %65, %67, %cst_52 {dimension_numbers = #tpu.dot_dimension_numbers<[1], [0], [0], [1], [0, 0, 1, 1], [], []>} : vector<128x4xbf16>, vector<4x128xbf16>, vector<128x128xf32> -> vector<128x128xf32>
    %69 = arith.addf %63, %68 : vector<128x128xf32>
    %c0_53 = arith.constant 0 : index
    %c0_54 = arith.constant 0 : index
    %70 = vector.load %arg5[%c0_53, %c0_54] : memref<1x128xf32, #tpu.memory_space<vmem>>, vector<1x128xf32>
    %71 = vector.broadcast %70 : vector<1x128xf32> to vector<128x128xf32>
    %72 = arith.mulf %69, %71 : vector<128x128xf32>
    %c0_55 = arith.constant 0 : index
    %c0_56 = arith.constant 0 : index
    %73 = vector.load %arg6[%c0_55, %c0_56] : memref<1x128xf32, #tpu.memory_space<vmem>>, vector<1x128xf32>
    %74 = vector.broadcast %73 : vector<1x128xf32> to vector<128x128xf32>
    %75 = arith.addf %72, %74 : vector<128x128xf32>
    %76 = vector.shape_cast %75 : vector<128x128xf32> to vector<1x8x16x128xf32>
    %c0_57 = arith.constant 0 : index
    %c0_58 = arith.constant 0 : index
    %c0_59 = arith.constant 0 : index
    %c0_60 = arith.constant 0 : index
    %77 = vector.load %arg7[%c0_57, %c0_58, %c0_59, %c0_60] : memref<1x8x16x128xf32, #tpu.memory_space<vmem>>, vector<1x8x16x128xf32>
    tpu.vector_store %arg7[%c0_57, %c0_58, %c0_59, %c0_60], %76 {strides = array<i32>} : memref<1x8x16x128xf32, #tpu.memory_space<vmem>>, vector<1x8x16x128xf32>,
    return
  }
  func.func @transform_0(%arg0: i32, %arg1: i32, %arg2: i32) -> (i32, i32, i32, i32) {
    %c0_i32 = arith.constant 0 : i32
    %c0_i32_0 = arith.constant 0 : i32
    %c0_i32_1 = arith.constant 0 : i32
    %c0_i32_2 = arith.constant 0 : i32
    return %arg0, %c0_i32, %c0_i32_0, %c0_i32_1 : i32, i32, i32, i32
  }
  func.func @transform_1(%arg0: i32, %arg1: i32, %arg2: i32) -> (i32, i32, i32, i32) {
    %c0_i32 = arith.constant 0 : i32
    %c0_i32_0 = arith.constant 0 : i32
    %c0_i32_1 = arith.constant 0 : i32
    %c0_i32_2 = arith.constant 0 : i32
    return %c0_i32, %c0_i32_0, %c0_i32_1, %arg1 : i32, i32, i32, i32
  }
  func.func @transform_2(%arg0: i32, %arg1: i32, %arg2: i32) -> (i32, i32) {
    %c0_i32 = arith.constant 0 : i32
    %c0_i32_0 = arith.constant 0 : i32
    return %c0_i32, %arg1 : i32, i32
  }
  func.func @transform_3(%arg0: i32, %arg1: i32, %arg2: i32) -> (i32, i32) {
    %c0_i32 = arith.constant 0 : i32
    %c0_i32_0 = arith.constant 0 : i32
    return %c0_i32, %arg1 : i32, i32
  }
  func.func @transform_4(%arg0: i32, %arg1: i32, %arg2: i32) -> (i32, i32, i32, i32) {
    %c0_i32 = arith.constant 0 : i32
    %c0_i32_0 = arith.constant 0 : i32
    return %arg0, %arg2, %c0_i32, %arg1 : i32, i32, i32, i32
  }
}

</mosaic_0001>

<llo_original>
// kernel: int_multiprec_conv2d_forward.1
$region0: #{int_multiprec_conv2d_forward.1}
  #allocation0 [shape = 'u32[]', space=smem, size = 0x4, offset = 0x4, fixed_abs, tag = 'smem constant byte address 0x4 - core index']
  #allocation1 [shape = 'u32[144,128]{1,0:T(1,128)}', space=vmem, size = 0x12000, scoped, tag = 'internal scratch']
  %s0 = inlined_call_operand.vmem [shape: bf16[2,18,18,4], index: 0, kind: input, shape index: {}]
  %s1 = inlined_call_operand.vmem [shape: bf16[3,3,4,128], index: 1, kind: input, shape index: {}]
  %s2 = inlined_call_operand.vmem [shape: f32[1,128], index: 2, kind: input, shape index: {}]
  %s3 = inlined_call_operand.vmem [shape: f32[1,128], index: 3, kind: input, shape index: {}]
  %s4 = inlined_call_operand.vmem [shape: f32[2,16,16,128], index: 4, kind: output, shape index: {}]
  %s5 = sld [smem:[#allocation0]]
  $region49: #{int_multiprec_conv2d_forward.1} parent=0
    _
  %s7 = ssub.s32 1, %s5
  %s8 = scalar_select 0, %s7, %s5
  loop: start=0, step=1, limit=6
  $region2: #{int_multiprec_conv2d_forward.1} parent=0 // loop_pre_header
    _
  $region3: #{int_multiprec_conv2d_forward.1} parent=0 // loop_header
    %s10 = sphi 0, %s14
    %p11 = scmp.ge.s32.totalorder %s10, 6
    %s17 = sphi 0, %s36
    %s18 = sphi 0, %s32
    %s19 = sphi 0, %s28
    %s20 = sphi 0, %s17
    %s21 = sphi 0, %s18
    %s22 = sphi 0, %s19
    %s23 = sphi 0, %s20
    %s24 = sphi 0, %s21
    %s25 = sphi 0, %s22
    %s39 = sphi 0, %s41
    %s42 = sphi 0, %s39
    %s43 = sphi 0, %s42
    %s59 = sphi 0, %s43
    %s65 = sphi 0, %s67
    %s68 = sphi 0, %s65
    %s69 = sphi 0, %s68
    %s85 = sphi 0, %s69
    %s91 = sphi 0, %s93
    %s94 = sphi 0, %s91
    %s95 = sphi 0, %s94
    %s111 = sphi 0, %s95
    %s117 = sphi 0, %s119
    %s120 = sphi 0, %s117
    %s121 = sphi 0, %s120
    %s137 = sphi 0, %s121
    %s147 = sphi 0, %s149
    %s150 = sphi 0, %s147
    %s151 = sphi 0, %s150
    %s167 = sphi 0, %s151
  $region4: #{int_multiprec_conv2d_forward.1} parent=0 // loop_header_branch
    %13 = sbr.rel (%p11) target = $region8
  $region5: #{int_multiprec_conv2d_forward.1} parent=0 // loop_body
    %s15 = ssub.s32 %s10, 1
    %s16 = ssub.s32 %s10, 2
    %s26 = sadd.s32 1, %s19
    %p27 = scmp.ge.s32.totalorder %s26, 2
    %s28 = scalar_select %p27, 0, %s26
    %s29 = sadd.s32 1, %s18
    %s30 = scalar_select %p27, %s29, %s18
    %p31 = scmp.ge.s32.totalorder %s30, 1
    %s32 = scalar_select %p31, 0, %s30
    %s33 = sadd.s32 1, %s17
    %s34 = scalar_select %p31, %s33, %s17
    %p35 = scmp.ge.s32.totalorder %s34, 2
    %s36 = scalar_select %p35, 0, %s34
    %s37 = ssub.s32 %s17, %s36
    %p38 = scmp.eq.s32.totalorder %s37, 0
    %s40 = sadd.s32 %s39, 1
    %s41 = scalar_select %p38, %s39, %s40
    %p44 = pneg %p38
    %p45 = scmp.eq.s32.totalorder %s10, 3
    %p46 = por %p44, %p45
    %p47 = scmp.ne.s32.totalorder %s39, %s42
    %p48 = scmp.eq.s32.totalorder %s10, 0
    %p49 = por %p47, %p48
    %p50 = scmp.ne.s32.totalorder %s39, %s42
    %p51 = scmp.eq.s32.totalorder %s15, 3
    %p52 = por %p50, %p51
    %p53 = scmp.ne.s32.totalorder %s42, %s43
    %p54 = scmp.eq.s32.totalorder %s15, 0
    %p55 = por %p53, %p54
    %p56 = scmp.ne.s32.totalorder %s42, %s43
    %p57 = scmp.eq.s32.totalorder %s16, 3
    %p58 = por %p56, %p57
    %p60 = scmp.ne.s32.totalorder %s43, %s59
    %p61 = scmp.eq.s32.totalorder %s16, 0
    %p62 = por %p60, %p61
    %s63 = ssub.s32 %s18, %s32
    %p64 = scmp.eq.s32.totalorder %s63, 0
    %s66 = sadd.s32 %s65, 1
    %s67 = scalar_select %p64, %s65, %s66
    %p70 = pneg %p64
    %p71 = scmp.eq.s32.totalorder %s10, 3
    %p72 = por %p70, %p71
    %p73 = scmp.ne.s32.totalorder %s65, %s68
    %p74 = scmp.eq.s32.totalorder %s10, 0
    %p75 = por %p73, %p74
    %p76 = scmp.ne.s32.totalorder %s65, %s68
    %p77 = scmp.eq.s32.totalorder %s15, 3
    %p78 = por %p76, %p77
    %p79 = scmp.ne.s32.totalorder %s68, %s69
    %p80 = scmp.eq.s32.totalorder %s15, 0
    %p81 = por %p79, %p80
    %p82 = scmp.ne.s32.totalorder %s68, %s69
    %p83 = scmp.eq.s32.totalorder %s16, 3
    %p84 = por %p82, %p83
    %p86 = scmp.ne.s32.totalorder %s69, %s85
    %p87 = scmp.eq.s32.totalorder %s16, 0
    %p88 = por %p86, %p87
    %s89 = ssub.s32 %s18, %s32
    %p90 = scmp.eq.s32.totalorder %s89, 0
    %s92 = sadd.s32 %s91, 1
    %s93 = scalar_select %p90, %s91, %s92
    %p96 = pneg %p90
    %p97 = scmp.eq.s32.totalorder %s10, 3
    %p98 = por %p96, %p97
    %p99 = scmp.ne.s32.totalorder %s91, %s94
    %p100 = scmp.eq.s32.totalorder %s10, 0
    %p101 = por %p99, %p100
    %p102 = scmp.ne.s32.totalorder %s91, %s94
    %p103 = scmp.eq.s32.totalorder %s15, 3
    %p104 = por %p102, %p103
    %p105 = scmp.ne.s32.totalorder %s94, %s95
    %p106 = scmp.eq.s32.totalorder %s15, 0
    %p107 = por %p105, %p106
    %p108 = scmp.ne.s32.totalorder %s94, %s95
    %p109 = scmp.eq.s32.totalorder %s16, 3
    %p110 = por %p108, %p109
    %p112 = scmp.ne.s32.totalorder %s95, %s111
    %p113 = scmp.eq.s32.totalorder %s16, 0
    %p114 = por %p112, %p113
    %s115 = ssub.s32 %s18, %s32
    %p116 = scmp.eq.s32.totalorder %s115, 0
    %s118 = sadd.s32 %s117, 1
    %s119 = scalar_select %p116, %s117, %s118
    %p122 = pneg %p116
    %p123 = scmp.eq.s32.totalorder %s10, 3
    %p124 = por %p122, %p123
    %p125 = scmp.ne.s32.totalorder %s117, %s120
    %p126 = scmp.eq.s32.totalorder %s10, 0
    %p127 = por %p125, %p126
    %p128 = scmp.ne.s32.totalorder %s117, %s120
    %p129 = scmp.eq.s32.totalorder %s15, 3
    %p130 = por %p128, %p129
    %p131 = scmp.ne.s32.totalorder %s120, %s121
    %p132 = scmp.eq.s32.totalorder %s15, 0
    %p133 = por %p131, %p132
    %p134 = scmp.ne.s32.totalorder %s120, %s121
    %p135 = scmp.eq.s32.totalorder %s16, 3
    %p136 = por %p134, %p135
    %p138 = scmp.ne.s32.totalorder %s121, %s137
    %p139 = scmp.eq.s32.totalorder %s16, 0
    %p140 = por %p138, %p139
    %s141 = ssub.s32 %s17, %s36
    %s142 = ssub.s32 %s19, %s28
    %s143 = sor.u32 %s141, %s142
    %s144 = ssub.s32 %s18, %s32
    %s145 = sor.u32 %s143, %s144
    %p146 = scmp.eq.s32.totalorder %s145, 0
    %s148 = sadd.s32 %s147, 1
    %s149 = scalar_select %p146, %s147, %s148
    %p152 = pneg %p146
    %p153 = scmp.eq.s32.totalorder %s10, 3
    %p154 = por %p152, %p153
    %p155 = scmp.ne.s32.totalorder %s147, %s150
    %p156 = scmp.eq.s32.totalorder %s10, 0
    %p157 = por %p155, %p156
    %p158 = scmp.ne.s32.totalorder %s147, %s150
    %p159 = scmp.eq.s32.totalorder %s15, 3
    %p160 = por %p158, %p159
    %p161 = scmp.ne.s32.totalorder %s150, %s151
    %p162 = scmp.eq.s32.totalorder %s15, 0
    %p163 = por %p161, %p162
    %p164 = scmp.ne.s32.totalorder %s150, %s151
    %p165 = scmp.eq.s32.totalorder %s16, 3
    %p166 = por %p164, %p165
    %p168 = scmp.ne.s32.totalorder %s151, %s167
    %p169 = scmp.eq.s32.totalorder %s16, 0
    %p170 = por %p168, %p169
    %p171 = scmp.le.s32.totalorder 1, %s10
    %p172 = scmp.lt.s32.totalorder %s10, 5
    %p173 = pnand %p171, %p172
    %p174 = pneg %p173
    // Predicated region
    $region9: #{int_multiprec_conv2d_forward.1} parent=5 // pred_check
      _
    $region10: #{int_multiprec_conv2d_forward.1} parent=5 // pred_check_branch
      %176 = sbr.rel (%p173) target = $region12
    $region11: #{int_multiprec_conv2d_forward.1} parent=5 // pred_region
      %s177 = ssub.s32 %s10, 1
      // Predicated region
      $region13: #{int_multiprec_conv2d_forward.1} parent=11 // pred_check
        %p178 = pneg %p81
      $region14: #{int_multiprec_conv2d_forward.1} parent=11 // pred_check_branch
        %180 = sbr.rel (%p178) target = $region16
      $region15: #{int_multiprec_conv2d_forward.1} parent=11 // pred_region
        %p181 = scmp.lt.s32.totalorder %s21, 0
        %s182 = scalar_select %p181, %s21, 0
        %s183 = smul.addr %s182, 2
        %s184 = scalar_lea.vmem %s1, %s183
      $region16: #{int_multiprec_conv2d_forward.1} parent=11 // pred_fallthru
        _
      // Predicated region
      $region17: #{int_multiprec_conv2d_forward.1} parent=11 // pred_check
        %p185 = pneg %p107
      $region18: #{int_multiprec_conv2d_forward.1} parent=11 // pred_check_branch
        %187 = sbr.rel (%p185) target = $region20
      $region19: #{int_multiprec_conv2d_forward.1} parent=11 // pred_region
        %p188 = scmp.lt.s32.totalorder %s21, 0
        %s189 = scalar_select %p188, %s21, 0
        %s190 = scalar_lea.vmem %s2, %s189
      $region20: #{int_multiprec_conv2d_forward.1} parent=11 // pred_fallthru
        _
      // Predicated region
      $region21: #{int_multiprec_conv2d_forward.1} parent=11 // pred_check
        %p191 = pneg %p133
      $region22: #{int_multiprec_conv2d_forward.1} parent=11 // pred_check_branch
        %193 = sbr.rel (%p191) target = $region24
      $region23: #{int_multiprec_conv2d_forward.1} parent=11 // pred_region
        %p194 = scmp.lt.s32.totalorder %s21, 0
        %s195 = scalar_select %p194, %s21, 0
        %s196 = scalar_lea.vmem %s3, %s195
      $region24: #{int_multiprec_conv2d_forward.1} parent=11 // pred_fallthru
        _
    $region12: #{int_multiprec_conv2d_forward.1} parent=5 // pred_fallthru
      _
    %p197 = scmp.lt.s32.totalorder %s10, 4
    // Predicated region
    $region25: #{int_multiprec_conv2d_forward.1} parent=5 // pred_check
      %p198 = pneg %p197
    $region26: #{int_multiprec_conv2d_forward.1} parent=5 // pred_check_branch
      %200 = sbr.rel (%p198) target = $region28
    $region27: #{int_multiprec_conv2d_forward.1} parent=5 // pred_region
      // Predicated region
      $region29: #{int_multiprec_conv2d_forward.1} parent=27 // pred_check
        %p201 = pneg %p49
      $region30: #{int_multiprec_conv2d_forward.1} parent=27 // pred_check_branch
        %203 = sbr.rel (%p201) target = $region32
      $region31: #{int_multiprec_conv2d_forward.1} parent=27 // pred_region
        %p204 = scmp.lt.s32.totalorder %s17, 1
        %s205 = scalar_select %p204, %s17, 1
        %s206 = smul.addr %s205, 54
        %s207 = smul.addr %s206, 4
        %s208 = scalar_lea.vmem %s0, %s207
      $region32: #{int_multiprec_conv2d_forward.1} parent=27 // pred_fallthru
        _
    $region28: #{int_multiprec_conv2d_forward.1} parent=5 // pred_fallthru
      _
    %p209 = scmp.le.s32.totalorder 1, %s10
    %p210 = scmp.lt.s32.totalorder %s10, 5
    %p211 = pnand %p209, %p210
    %p212 = pneg %p211
    // Predicated region
    $region33: #{int_multiprec_conv2d_forward.1} parent=5 // pred_check
      _
    $region34: #{int_multiprec_conv2d_forward.1} parent=5 // pred_check_branch
      %214 = sbr.rel (%p211) target = $region36
    $region35: #{int_multiprec_conv2d_forward.1} parent=5 // pred_region
      %s215 = ssub.s32 %s10, 1
      %p216 = scmp.lt.s32.totalorder %s20, 1
      %s217 = scalar_select %p216, %s20, 1
      %s218 = smul.addr %s217, 54
      %s219 = smul.addr %s218, 4
      %s220 = scalar_lea.vmem %s0, %s219
      %p221 = pneg %p55
      %p222 = pneg %p52
      %p223 = scmp.lt.s32.totalorder %s21, 0
      %s224 = scalar_select %p223, %s21, 0
      %s225 = smul.addr %s224, 2
      %s226 = scalar_lea.vmem %s1, %s225
      %p227 = pneg %p81
      %p228 = pneg %p78
      %p229 = scmp.lt.s32.totalorder %s21, 0
      %s230 = scalar_select %p229, %s21, 0
      %s231 = scalar_lea.vmem %s2, %s230
      %p232 = pneg %p107
      %p233 = pneg %p104
      %p234 = scmp.lt.s32.totalorder %s21, 0
      %s235 = scalar_select %p234, %s21, 0
      %s236 = scalar_lea.vmem %s3, %s235
      %p237 = pneg %p133
      %p238 = pneg %p130
      %p239 = pneg %p163
      %p240 = pneg %p160
      %s241 = smul.u32 8, %s22
      %p242 = scmp.lt.s32.totalorder %s20, 1
      %s243 = scalar_select %p242, %s20, 1
      %p244 = scmp.lt.s32.totalorder %s241, 15
      %s245 = scalar_select %p244, %s241, 15
      %p246 = scmp.lt.s32.totalorder %s21, 0
      %s247 = scalar_select %p246, %s21, 0
      %s248 = smul.addr %s245, 2
      %s249 = sadd.s32 %s247, %s248
      %s250 = smul.addr %s243, 32
      %s251 = sadd.s32 %s249, %s250
      %s252 = smul.addr %s251, 8
      %s253 = scalar_lea.vmem %s4, %s252
      %p254 = scmp.lt.s32.totalorder %s20, 1
      %s255 = scalar_select %p254, %s20, 1
      %s256 = smul.addr %s255, 54
      %s257 = smul.addr %s256, 4
      %s258 = scalar_lea.vmem %s0, %s257
      %p259 = scmp.lt.s32.totalorder %s21, 0
      %s260 = scalar_select %p259, %s21, 0
      %s261 = smul.addr %s260, 2
      %s262 = scalar_lea.vmem %s1, %s261
      %p263 = scmp.lt.s32.totalorder %s21, 0
      %s264 = scalar_select %p263, %s21, 0
      %s265 = scalar_lea.vmem %s2, %s264
      %p266 = scmp.lt.s32.totalorder %s21, 0
      %s267 = scalar_select %p266, %s21, 0
      %s268 = scalar_lea.vmem %s3, %s267
      %s269 = smul.u32 8, %s22
      %p270 = scmp.lt.s32.totalorder %s20, 1
      %s271 = scalar_select %p270, %s20, 1
      %p272 = scmp.lt.s32.totalorder %s269, 15
      %s273 = scalar_select %p272, %s269, 15
      %p274 = scmp.lt.s32.totalorder %s21, 0
      %s275 = scalar_select %p274, %s21, 0
      %s276 = smul.addr %s273, 2
      %s277 = sadd.s32 %s275, %s276
      %s278 = smul.addr %s271, 32
      %s279 = sadd.s32 %s277, %s278
      %s280 = smul.addr %s279, 8
      %s281 = scalar_lea.vmem %s4, %s280
      %s282 = smul.u32 8, %s22
      %s284 = smul.u32 %s22, 8
      %s285 = smul.u32 %s284, 3
      %s286 = smul.addr %s285, 4
      %s287 = scalar_lea.vmem %s258, %s286
      %v288 = vld [vmem:[%s287] sm:$0xf]
      %v289 = vld [vmem:[%s287 + $0x4] sm:$0xf]
      %v290 = vld [vmem:[%s287 + $0x8] sm:$0x1]
      %v291 = vld [vmem:[%s287 + $0xc] sm:$0xf]
      %v292 = vld [vmem:[%s287 + $0x10] sm:$0xf]
      %v293 = vld [vmem:[%s287 + $0x14] sm:$0x1]
      %v294 = vld [vmem:[%s287 + $0x18] sm:$0xf]
      %v295 = vld [vmem:[%s287 + $0x1c] sm:$0xf]
      %v296 = vld [vmem:[%s287 + $0x20] sm:$0x1]
      %v297 = vld [vmem:[%s287 + $0x24] sm:$0xf]
      %v298 = vld [vmem:[%s287 + $0x28] sm:$0xf]
      %v299 = vld [vmem:[%s287 + $0x2c] sm:$0x1]
      %v300 = vld [vmem:[%s287 + $0x30] sm:$0xf]
      %v301 = vld [vmem:[%s287 + $0x34] sm:$0xf]
      %v302 = vld [vmem:[%s287 + $0x38] sm:$0x1]
      %v303 = vld [vmem:[%s287 + $0x3c] sm:$0xf]
      %v304 = vld [vmem:[%s287 + $0x40] sm:$0xf]
      %v305 = vld [vmem:[%s287 + $0x44] sm:$0x1]
      %v306 = vld [vmem:[%s287 + $0x48] sm:$0xf]
      %v307 = vld [vmem:[%s287 + $0x4c] sm:$0xf]
      %v308 = vld [vmem:[%s287 + $0x50] sm:$0x1]
      %v309 = vld [vmem:[%s287 + $0x54] sm:$0xf]
      %v310 = vld [vmem:[%s287 + $0x58] sm:$0xf]
      %v311 = vld [vmem:[%s287 + $0x5c] sm:$0x1]
      %v312 = vld [vmem:[%s262] sm:$0x3]
      %vm313 = vsmask.f32 3328
      %vm314 = vsmask.f32 7440
      %vm315 = vmor %vm313, %vm314
      %v317 = vshrl.u32 %v288, 16
      %v319 = vrot.slane %v317, 4
      %v320 = vshll.u32 %v288, 16
      %v322 = vrot.slane %v320, 5
      %v323 = vor.u32 %v319, %v322
      %v324 = vrot.slane %v323, 4
      %v326 = vshll.u32 %v289, 16
      %v328 = vrot.slane %v326, 5
      %v329 = vsel %vm315, %v324, %v328
      %v330 = vshrl.u32 %v289, 16
      %v332 = vrot.slane %v330, 4
      %v333 = vor.u32 %v332, %v328
      %v334 = vrot.slane %v333, 4
      %v336 = vshll.u32 %v290, 16
      %v338 = vrot.slane %v336, 5
      %v339 = vsel %vm315, %v334, %v338
      %v341 = vshrl.u32 %v291, 16
      %v343 = vrot.slane %v341, 4
      %v344 = vshll.u32 %v291, 16
      %v346 = vrot.slane %v344, 5
      %v347 = vor.u32 %v343, %v346
      %v348 = vrot.slane %v347, 4
      %v350 = vshll.u32 %v292, 16
      %v352 = vrot.slane %v350, 5
      %v353 = vsel %vm315, %v348, %v352
      %v354 = vshrl.u32 %v292, 16
      %v356 = vrot.slane %v354, 4
      %v357 = vor.u32 %v356, %v352
      %v358 = vrot.slane %v357, 4
      %v360 = vshll.u32 %v293, 16
      %v362 = vrot.slane %v360, 5
      %v363 = vsel %vm315, %v358, %v362
      %v365 = vshrl.u32 %v294, 16
      %v367 = vrot.slane %v365, 4
      %v368 = vshll.u32 %v294, 16
      %v370 = vrot.slane %v368, 5
      %v371 = vor.u32 %v367, %v370
      %v372 = vrot.slane %v371, 4
      %v374 = vshll.u32 %v295, 16
      %v376 = vrot.slane %v374, 5
      %v377 = vsel %vm315, %v372, %v376
      %v378 = vshrl.u32 %v295, 16
      %v380 = vrot.slane %v378, 4
      %v381 = vor.u32 %v380, %v376
      %v382 = vrot.slane %v381, 4
      %v384 = vshll.u32 %v296, 16
      %v386 = vrot.slane %v384, 5
      %v387 = vsel %vm315, %v382, %v386
      %v389 = vshrl.u32 %v297, 16
      %v391 = vrot.slane %v389, 4
      %v392 = vshll.u32 %v297, 16
      %v394 = vrot.slane %v392, 5
      %v395 = vor.u32 %v391, %v394
      %v396 = vrot.slane %v395, 4
      %v398 = vshll.u32 %v298, 16
      %v400 = vrot.slane %v398, 5
      %v401 = vsel %vm315, %v396, %v400
      %v402 = vshrl.u32 %v298, 16
      %v404 = vrot.slane %v402, 4
      %v405 = vor.u32 %v404, %v400
      %v406 = vrot.slane %v405, 4
      %v408 = vshll.u32 %v299, 16
      %v410 = vrot.slane %v408, 5
      %v411 = vsel %vm315, %v406, %v410
      %v413 = vshrl.u32 %v300, 16
      %v415 = vrot.slane %v413, 4
      %v416 = vshll.u32 %v300, 16
      %v418 = vrot.slane %v416, 5
      %v419 = vor.u32 %v415, %v418
      %v420 = vrot.slane %v419, 4
      %v422 = vshll.u32 %v301, 16
      %v424 = vrot.slane %v422, 5
      %v425 = vsel %vm315, %v420, %v424
      %v426 = vshrl.u32 %v301, 16
      %v428 = vrot.slane %v426, 4
      %v429 = vor.u32 %v428, %v424
      %v430 = vrot.slane %v429, 4
      %v432 = vshll.u32 %v302, 16
      %v434 = vrot.slane %v432, 5
      %v435 = vsel %vm315, %v430, %v434
      %v437 = vshrl.u32 %v303, 16
      %v439 = vrot.slane %v437, 4
      %v440 = vshll.u32 %v303, 16
      %v442 = vrot.slane %v440, 5
      %v443 = vor.u32 %v439, %v442
      %v444 = vrot.slane %v443, 4
      %v446 = vshll.u32 %v304, 16
      %v448 = vrot.slane %v446, 5
      %v449 = vsel %vm315, %v444, %v448
      %v450 = vshrl.u32 %v304, 16
      %v452 = vrot.slane %v450, 4
      %v453 = vor.u32 %v452, %v448
      %v454 = vrot.slane %v453, 4
      %v456 = vshll.u32 %v305, 16
      %v458 = vrot.slane %v456, 5
      %v459 = vsel %vm315, %v454, %v458
      %v461 = vshrl.u32 %v306, 16
      %v463 = vrot.slane %v461, 4
      %v464 = vshll.u32 %v306, 16
      %v466 = vrot.slane %v464, 5
      %v467 = vor.u32 %v463, %v466
      %v468 = vrot.slane %v467, 4
      %v470 = vshll.u32 %v307, 16
      %v472 = vrot.slane %v470, 5
      %v473 = vsel %vm315, %v468, %v472
      %v474 = vshrl.u32 %v307, 16
      %v476 = vrot.slane %v474, 4
      %v477 = vor.u32 %v476, %v472
      %v478 = vrot.slane %v477, 4
      %v480 = vshll.u32 %v308, 16
      %v482 = vrot.slane %v480, 5
      %v483 = vsel %vm315, %v478, %v482
      %v485 = vshrl.u32 %v309, 16
      %v487 = vrot.slane %v485, 4
      %v488 = vshll.u32 %v309, 16
      %v490 = vrot.slane %v488, 5
      %v491 = vor.u32 %v487, %v490
      %v492 = vrot.slane %v491, 4
      %v494 = vshll.u32 %v310, 16
      %v496 = vrot.slane %v494, 5
      %v497 = vsel %vm315, %v492, %v496
      %v498 = vshrl.u32 %v310, 16
      %v500 = vrot.slane %v498, 4
      %v501 = vor.u32 %v500, %v496
      %v502 = vrot.slane %v501, 4
      %v504 = vshll.u32 %v311, 16
      %v506 = vrot.slane %v504, 5
      %v507 = vsel %vm315, %v502, %v506
      %s508 = scalar_lea.vmem %s262, 2
      %v509 = vld [vmem:[%s508] sm:$0x3]
      %v510 = vunpack.c.l.b16 %v329
      %v511 = vunpack.c.l.b16 %v339
      %v512 = vunpack.c.l.b16 %v353
      %v513 = vunpack.c.l.b16 %v363
      %v514 = vunpack.c.l.b16 %v377
      %v515 = vunpack.c.l.b16 %v387
      %v516 = vunpack.c.l.b16 %v401
      %v517 = vunpack.c.l.b16 %v411
      %v518 = vunpack.c.l.b16 %v425
      %v519 = vunpack.c.l.b16 %v435
      %v520 = vunpack.c.l.b16 %v449
      %v521 = vunpack.c.l.b16 %v459
      %v522 = vunpack.c.l.b16 %v473
      %v523 = vunpack.c.l.b16 %v483
      %v524 = vunpack.c.l.b16 %v497
      %v525 = vunpack.c.l.b16 %v507
      %v526 = vpack.c.b16 %v511, %v510
      %v527 = vpack.c.b16 %v513, %v512
      %v528 = vpack.c.b16 %v515, %v514
      %v529 = vpack.c.b16 %v517, %v516
      %v530 = vpack.c.b16 %v519, %v518
      %v531 = vpack.c.b16 %v521, %v520
      %v532 = vpack.c.b16 %v523, %v522
      %v533 = vpack.c.b16 %v525, %v524
      %vm534 = vcmask 31744
      %v536 = vsel %vm534, %v526, 0
      %v539 = vsel %vm534, %v527, 0
      %v542 = vsel %vm534, %v528, 0
      %v545 = vsel %vm534, %v529, 0
      %v548 = vsel %vm534, %v530, 0
      %v551 = vsel %vm534, %v531, 0
      %v554 = vsel %vm534, %v532, 0
      %v557 = vsel %vm534, %v533, 0
      %vm559 = vcmask 1041408
      %v561 = vsel %vm559, %v509, 0
      %563 = vmatprep.subr.bf16.mxu0 0
      %564 = vmatpush1.bf16.msra.mxu0 %v561
      %565 = vmatprep.subr.bf16.mxu0 0
      %566 = vmatpush1.bf16.msra.mxu0 0
      %567 = vmatprep.subr.bf16.mxu0 0
      %568 = vmatpush1.bf16.msra.mxu0 0
      %569 = vmatprep.subr.bf16.mxu0 0
      %570 = vmatpush1.bf16.msra.mxu0 0
      %571 = vmatprep.subr.bf16.mxu0 0
      %572 = vmatpush1.bf16.msra.mxu0 0
      %573 = vmatprep.subr.bf16.mxu0 0
      %574 = vmatpush1.bf16.msra.mxu0 0
      %575 = vmatprep.subr.bf16.mxu0 0
      %576 = vmatpush1.bf16.msra.mxu0 0
      %577 = vmatprep.subr.bf16.mxu0 0
      %578 = vmatpush1.bf16.msra.mxu0 0
      %579 = vmatprep.subr.bf16.mxu0 0
      %580 = vmatpush1.bf16.msra.mxu0 0
      %581 = vmatprep.subr.bf16.mxu0 0
      %582 = vmatpush1.bf16.msra.mxu0 0
      %583 = vmatprep.subr.bf16.mxu0 0
      %584 = vmatpush1.bf16.msra.mxu0 0
      %585 = vmatprep.subr.bf16.mxu0 0
      %586 = vmatpush1.bf16.msra.mxu0 0
      %587 = vmatprep.subr.bf16.mxu0 0
      %588 = vmatpush1.bf16.msra.mxu0 0
      %589 = vmatprep.subr.bf16.mxu0 0
      %590 = vmatpush1.bf16.msra.mxu0 0
      %591 = vmatprep.subr.bf16.mxu0 0
      %592 = vmatpush1.bf16.msra.mxu0 0
      %593 = vmatprep.subr.bf16.mxu0 0
      %594 = vmatpush1.bf16.msra.mxu0 0
      %595 = vmatprep.mubr.bf16.mxu0 0
      %596 = vmatmul.mubr.bf16.gmra.mrb[0].mxu0 %v536
      %v597 = vpop.f32.mrb[0].mxu0
      %v598 = vadd.f32 0.0, %v597
      %v599 = vpop.f32.mrb[0].mxu0
      %v600 = vpop.f32.mrb[0].mxu0
      %v601 = vadd.f32 0.0, %v600
      %v602 = vpop.f32.mrb[0].mxu0
      %603 = vmatprep.mubr.bf16.mxu0 0
      %604 = vmatmul.mubr.bf16.gmra.mrb[0].mxu0 %v539
      %v605 = vpop.f32.mrb[0].mxu0
      %v606 = vadd.f32 0.0, %v605
      %v607 = vpop.f32.mrb[0].mxu0
      %v608 = vpop.f32.mrb[0].mxu0
      %v609 = vadd.f32 0.0, %v608
      %v610 = vpop.f32.mrb[0].mxu0
      %611 = vmatprep.mubr.bf16.mxu0 0
      %612 = vmatmul.mubr.bf16.gmra.mrb[0].mxu0 %v542
      %v613 = vpop.f32.mrb[0].mxu0
      %v614 = vadd.f32 0.0, %v613
      %v615 = vpop.f32.mrb[0].mxu0
      %v616 = vpop.f32.mrb[0].mxu0
      %v617 = vadd.f32 0.0, %v616
      %v618 = vpop.f32.mrb[0].mxu0
      %619 = vmatprep.mubr.bf16.mxu0 0
      %620 = vmatmul.mubr.bf16.gmra.mrb[0].mxu0 %v545
      %v621 = vpop.f32.mrb[0].mxu0
      %v622 = vadd.f32 0.0, %v621
      %v623 = vpop.f32.mrb[0].mxu0
      %v624 = vpop.f32.mrb[0].mxu0
      %v625 = vadd.f32 0.0, %v624
      %v626 = vpop.f32.mrb[0].mxu0
      %627 = vmatprep.mubr.bf16.mxu0 0
      %628 = vmatmul.mubr.bf16.gmra.mrb[0].mxu0 %v548
      %v629 = vpop.f32.mrb[0].mxu0
      %v630 = vadd.f32 0.0, %v629
      %v631 = vpop.f32.mrb[0].mxu0
      %v632 = vpop.f32.mrb[0].mxu0
      %v633 = vadd.f32 0.0, %v632
      %v634 = vpop.f32.mrb[0].mxu0
      %635 = vmatprep.mubr.bf16.mxu0 0
      %636 = vmatmul.mubr.bf16.gmra.mrb[0].mxu0 %v551
      %v637 = vpop.f32.mrb[0].mxu0
      %v638 = vadd.f32 0.0, %v637
      %v639 = vpop.f32.mrb[0].mxu0
      %v640 = vpop.f32.mrb[0].mxu0
      %v641 = vadd.f32 0.0, %v640
      %v642 = vpop.f32.mrb[0].mxu0
      %643 = vmatprep.mubr.bf16.mxu0 0
      %644 = vmatmul.mubr.bf16.gmra.mrb[0].mxu0 %v554
      %v645 = vpop.f32.mrb[0].mxu0
      %v646 = vadd.f32 0.0, %v645
      %v647 = vpop.f32.mrb[0].mxu0
      %v648 = vpop.f32.mrb[0].mxu0
      %v649 = vadd.f32 0.0, %v648
      %v650 = vpop.f32.mrb[0].mxu0
      %651 = vmatprep.mubr.bf16.mxu0 0
      %652 = vmatmul.mubr.bf16.gmra.mrb[0].mxu0 %v557
      %v653 = vpop.f32.mrb[0].mxu0
      %v654 = vadd.f32 0.0, %v653
      %v655 = vpop.f32.mrb[0].mxu0
      %v656 = vpop.f32.mrb[0].mxu0
      %v657 = vadd.f32 0.0, %v656
      %v658 = vpop.f32.mrb[0].mxu0
      %659 = vdwg.mxu0
      %v676 = vunpack.c.l.b16 %v288
      %v677 = vunpack.c.l.b16 %v289
      %v678 = vunpack.c.l.b16 %v291
      %v679 = vunpack.c.l.b16 %v292
      %v680 = vunpack.c.l.b16 %v294
      %v681 = vunpack.c.l.b16 %v295
      %v682 = vunpack.c.l.b16 %v297
      %v683 = vunpack.c.l.b16 %v298
      %v684 = vunpack.c.l.b16 %v300
      %v685 = vunpack.c.l.b16 %v301
      %v686 = vunpack.c.l.b16 %v303
      %v687 = vunpack.c.l.b16 %v304
      %v688 = vunpack.c.l.b16 %v306
      %v689 = vunpack.c.l.b16 %v307
      %v690 = vunpack.c.l.b16 %v309
      %v691 = vunpack.c.l.b16 %v310
      %v692 = vpack.c.b16 %v677, %v676
      %v693 = vpack.c.b16 %v679, %v678
      %v694 = vpack.c.b16 %v681, %v680
      %v695 = vpack.c.b16 %v683, %v682
      %v696 = vpack.c.b16 %v685, %v684
      %v697 = vpack.c.b16 %v687, %v686
      %v698 = vpack.c.b16 %v689, %v688
      %v699 = vpack.c.b16 %v691, %v690
      %v701 = vsel %vm534, %v692, 0
      %v704 = vsel %vm534, %v693, 0
      %v707 = vsel %vm534, %v694, 0
      %v710 = vsel %vm534, %v695, 0
      %v713 = vsel %vm534, %v696, 0
      %v716 = vsel %vm534, %v697, 0
      %v719 = vsel %vm534, %v698, 0
      %v722 = vsel %vm534, %v699, 0
      %v725 = vsel %vm559, %v312, 0
      %727 = vmatprep.subr.bf16.mxu0 0
      %728 = vmatpush1.bf16.msra.mxu0 %v725
      %729 = vmatprep.subr.bf16.mxu0 0
      %730 = vmatpush1.bf16.msra.mxu0 0
      %731 = vmatprep.subr.bf16.mxu0 0
      %732 = vmatpush1.bf16.msra.mxu0 0
      %733 = vmatprep.subr.bf16.mxu0 0
      %734 = vmatpush1.bf16.msra.mxu0 0
      %735 = vmatprep.subr.bf16.mxu0 0
      %736 = vmatpush1.bf16.msra.mxu0 0
      %737 = vmatprep.subr.bf16.mxu0 0
      %738 = vmatpush1.bf16.msra.mxu0 0
      %739 = vmatprep.subr.bf16.mxu0 0
      %740 = vmatpush1.bf16.msra.mxu0 0
      %741 = vmatprep.subr.bf16.mxu0 0
      %742 = vmatpush1.bf16.msra.mxu0 0
      %743 = vmatprep.subr.bf16.mxu0 0
      %744 = vmatpush1.bf16.msra.mxu0 0
      %745 = vmatprep.subr.bf16.mxu0 0
      %746 = vmatpush1.bf16.msra.mxu0 0
      %747 = vmatprep.subr.bf16.mxu0 0
      %748 = vmatpush1.bf16.msra.mxu0 0
      %749 = vmatprep.subr.bf16.mxu0 0
      %750 = vmatpush1.bf16.msra.mxu0 0
      %751 = vmatprep.subr.bf16.mxu0 0
      %752 = vmatpush1.bf16.msra.mxu0 0
      %753 = vmatprep.subr.bf16.mxu0 0
      %754 = vmatpush1.bf16.msra.mxu0 0
      %755 = vmatprep.subr.bf16.mxu0 0
      %756 = vmatpush1.bf16.msra.mxu0 0
      %757 = vmatprep.subr.bf16.mxu0 0
      %758 = vmatpush1.bf16.msra.mxu0 0
      %759 = vmatprep.mubr.bf16.mxu0 0
      %760 = vmatmul.mubr.bf16.gmra.mrb[0].mxu0 %v701
      %v761 = vpop.f32.mrb[0].mxu0
      %v762 = vadd.f32 %v598, %v761
      %v763 = vpop.f32.mrb[0].mxu0
      %v764 = vpop.f32.mrb[0].mxu0
      %v765 = vadd.f32 %v601, %v764
      %v766 = vpop.f32.mrb[0].mxu0
      %767 = vmatprep.mubr.bf16.mxu0 0
      %768 = vmatmul.mubr.bf16.gmra.mrb[0].mxu0 %v704
      %v769 = vpop.f32.mrb[0].mxu0
      %v770 = vadd.f32 %v606, %v769
      %v771 = vpop.f32.mrb[0].mxu0
      %v772 = vpop.f32.mrb[0].mxu0
      %v773 = vadd.f32 %v609, %v772
      %v774 = vpop.f32.mrb[0].mxu0
      %775 = vmatprep.mubr.bf16.mxu0 0
      %776 = vmatmul.mubr.bf16.gmra.mrb[0].mxu0 %v707
      %v777 = vpop.f32.mrb[0].mxu0
      %v778 = vadd.f32 %v614, %v777
      %v779 = vpop.f32.mrb[0].mxu0
      %v780 = vpop.f32.mrb[0].mxu0
      %v781 = vadd.f32 %v617, %v780
      %v782 = vpop.f32.mrb[0].mxu0
      %783 = vmatprep.mubr.bf16.mxu0 0
      %784 = vmatmul.mubr.bf16.gmra.mrb[0].mxu0 %v710
      %v785 = vpop.f32.mrb[0].mxu0
      %v786 = vadd.f32 %v622, %v785
      %v787 = vpop.f32.mrb[0].mxu0
      %v788 = vpop.f32.mrb[0].mxu0
      %v789 = vadd.f32 %v625, %v788
      %v790 = vpop.f32.mrb[0].mxu0
      %791 = vmatprep.mubr.bf16.mxu0 0
      %792 = vmatmul.mubr.bf16.gmra.mrb[0].mxu0 %v713
      %v793 = vpop.f32.mrb[0].mxu0
      %v794 = vadd.f32 %v630, %v793
      %v795 = vpop.f32.mrb[0].mxu0
      %v796 = vpop.f32.mrb[0].mxu0
      %v797 = vadd.f32 %v633, %v796
      %v798 = vpop.f32.mrb[0].mxu0
      %799 = vmatprep.mubr.bf16.mxu0 0
      %800 = vmatmul.mubr.bf16.gmra.mrb[0].mxu0 %v716
      %v801 = vpop.f32.mrb[0].mxu0
      %v802 = vadd.f32 %v638, %v801
      %v803 = vpop.f32.mrb[0].mxu0
      %v804 = vpop.f32.mrb[0].mxu0
      %v805 = vadd.f32 %v641, %v804
      %v806 = vpop.f32.mrb[0].mxu0
      %807 = vmatprep.mubr.bf16.mxu0 0
      %808 = vmatmul.mubr.bf16.gmra.mrb[0].mxu0 %v719
      %v809 = vpop.f32.mrb[0].mxu0
      %v810 = vadd.f32 %v646, %v809
      %v811 = vpop.f32.mrb[0].mxu0
      %v812 = vpop.f32.mrb[0].mxu0
      %v813 = vadd.f32 %v649, %v812
      %v814 = vpop.f32.mrb[0].mxu0
      %815 = vmatprep.mubr.bf16.mxu0 0
      %816 = vmatmul.mubr.bf16.gmra.mrb[0].mxu0 %v722
      %v817 = vpop.f32.mrb[0].mxu0
      %v818 = vadd.f32 %v654, %v817
      %v819 = vpop.f32.mrb[0].mxu0
      %v820 = vpop.f32.mrb[0].mxu0
      %v821 = vadd.f32 %v657, %v820
      %v822 = vpop.f32.mrb[0].mxu0
      %823 = vdwg.mxu0
      %vm832 = vcmask 1042432
      %vm833 = vcmask 1046532
      %vm834 = vmor %vm832, %vm833
      %v835 = vrot.slane %v288, 5
      %v836 = vrot.slane %v835, 4
      %v837 = vrot.slane %v289, 5
      %v838 = vsel %vm834, %v836, %v837
      %v839 = vrot.slane %v837, 4
      %v840 = vrot.slane %v290, 5
      %v841 = vsel %vm834, %v839, %v840
      %v842 = vrot.slane %v291, 5
      %v843 = vrot.slane %v842, 4
      %v844 = vrot.slane %v292, 5
      %v845 = vsel %vm834, %v843, %v844
      %v846 = vrot.slane %v844, 4
      %v847 = vrot.slane %v293, 5
      %v848 = vsel %vm834, %v846, %v847
      %v849 = vrot.slane %v294, 5
      %v850 = vrot.slane %v849, 4
      %v851 = vrot.slane %v295, 5
      %v852 = vsel %vm834, %v850, %v851
      %v853 = vrot.slane %v851, 4
      %v854 = vrot.slane %v296, 5
      %v855 = vsel %vm834, %v853, %v854
      %v856 = vrot.slane %v297, 5
      %v857 = vrot.slane %v856, 4
      %v858 = vrot.slane %v298, 5
      %v859 = vsel %vm834, %v857, %v858
      %v860 = vrot.slane %v858, 4
      %v861 = vrot.slane %v299, 5
      %v862 = vsel %vm834, %v860, %v861
      %v863 = vrot.slane %v300, 5
      %v864 = vrot.slane %v863, 4
      %v865 = vrot.slane %v301, 5
      %v866 = vsel %vm834, %v864, %v865
      %v867 = vrot.slane %v865, 4
      %v868 = vrot.slane %v302, 5
      %v869 = vsel %vm834, %v867, %v868
      %v870 = vrot.slane %v303, 5
      %v871 = vrot.slane %v870, 4
      %v872 = vrot.slane %v304, 5
      %v873 = vsel %vm834, %v871, %v872
      %v874 = vrot.slane %v872, 4
      %v875 = vrot.slane %v305, 5
      %v876 = vsel %vm834, %v874, %v875
      %v877 = vrot.slane %v306, 5
      %v878 = vrot.slane %v877, 4
      %v879 = vrot.slane %v307, 5
      %v880 = vsel %vm834, %v878, %v879
      %v881 = vrot.slane %v879, 4
      %v882 = vrot.slane %v308, 5
      %v883 = vsel %vm834, %v881, %v882
      %v884 = vrot.slane %v309, 5
      %v885 = vrot.slane %v884, 4
      %v886 = vrot.slane %v310, 5
      %v887 = vsel %vm834, %v885, %v886
      %v888 = vrot.slane %v886, 4
      %v889 = vrot.slane %v311, 5
      %v890 = vsel %vm834, %v888, %v889
      %s891 = scalar_lea.vmem %s262, 4
      %v892 = vld [vmem:[%s891] sm:$0x3]
      %v893 = vunpack.c.l.b16 %v838
      %v894 = vunpack.c.l.b16 %v841
      %v895 = vunpack.c.l.b16 %v845
      %v896 = vunpack.c.l.b16 %v848
      %v897 = vunpack.c.l.b16 %v852
      %v898 = vunpack.c.l.b16 %v855
      %v899 = vunpack.c.l.b16 %v859
      %v900 = vunpack.c.l.b16 %v862
      %v901 = vunpack.c.l.b16 %v866
      %v902 = vunpack.c.l.b16 %v869
      %v903 = vunpack.c.l.b16 %v873
      %v904 = vunpack.c.l.b16 %v876
      %v905 = vunpack.c.l.b16 %v880
      %v906 = vunpack.c.l.b16 %v883
      %v907 = vunpack.c.l.b16 %v887
      %v908 = vunpack.c.l.b16 %v890
      %v909 = vpack.c.b16 %v894, %v893
      %v910 = vpack.c.b16 %v896, %v895
      %v911 = vpack.c.b16 %v898, %v897
      %v912 = vpack.c.b16 %v900, %v899
      %v913 = vpack.c.b16 %v902, %v901
      %v914 = vpack.c.b16 %v904, %v903
      %v915 = vpack.c.b16 %v906, %v905
      %v916 = vpack.c.b16 %v908, %v907
      %v918 = vsel %vm534, %v909, 0
      %v921 = vsel %vm534, %v910, 0
      %v924 = vsel %vm534, %v911, 0
      %v927 = vsel %vm534, %v912, 0
      %v930 = vsel %vm534, %v913, 0
      %v933 = vsel %vm534, %v914, 0
      %v936 = vsel %vm534, %v915, 0
      %v939 = vsel %vm534, %v916, 0
      %v942 = vsel %vm559, %v892, 0
      %944 = vmatprep.subr.bf16.mxu0 0
      %945 = vmatpush1.bf16.msra.mxu0 %v942
      %946 = vmatprep.subr.bf16.mxu0 0
      %947 = vmatpush1.bf16.msra.mxu0 0
      %948 = vmatprep.subr.bf16.mxu0 0
      %949 = vmatpush1.bf16.msra.mxu0 0
      %950 = vmatprep.subr.bf16.mxu0 0
      %951 = vmatpush1.bf16.msra.mxu0 0
      %952 = vmatprep.subr.bf16.mxu0 0
      %953 = vmatpush1.bf16.msra.mxu0 0
      %954 = vmatprep.subr.bf16.mxu0 0
      %955 = vmatpush1.bf16.msra.mxu0 0
      %956 = vmatprep.subr.bf16.mxu0 0
      %957 = vmatpush1.bf16.msra.mxu0 0
      %958 = vmatprep.subr.bf16.mxu0 0
      %959 = vmatpush1.bf16.msra.mxu0 0
      %960 = vmatprep.subr.bf16.mxu0 0
      %961 = vmatpush1.bf16.msra.mxu0 0
      %962 = vmatprep.subr.bf16.mxu0 0
      %963 = vmatpush1.bf16.msra.mxu0 0
      %964 = vmatprep.subr.bf16.mxu0 0
      %965 = vmatpush1.bf16.msra.mxu0 0
      %966 = vmatprep.subr.bf16.mxu0 0
      %967 = vmatpush1.bf16.msra.mxu0 0
      %968 = vmatprep.subr.bf16.mxu0 0
      %969 = vmatpush1.bf16.msra.mxu0 0
      %970 = vmatprep.subr.bf16.mxu0 0
      %971 = vmatpush1.bf16.msra.mxu0 0
      %972 = vmatprep.subr.bf16.mxu0 0
      %973 = vmatpush1.bf16.msra.mxu0 0
      %974 = vmatprep.subr.bf16.mxu0 0
      %975 = vmatpush1.bf16.msra.mxu0 0
      %976 = vmatprep.mubr.bf16.mxu0 0
      %977 = vmatmul.mubr.bf16.gmra.mrb[0].mxu0 %v918
      %v978 = vpop.f32.mrb[0].mxu0
      %v979 = vadd.f32 0.0, %v978
      %v980 = vpop.f32.mrb[0].mxu0
      %v981 = vpop.f32.mrb[0].mxu0
      %v982 = vadd.f32 0.0, %v981
      %v983 = vpop.f32.mrb[0].mxu0
      %984 = vmatprep.mubr.bf16.mxu0 0
      %985 = vmatmul.mubr.bf16.gmra.mrb[0].mxu0 %v921
      %v986 = vpop.f32.mrb[0].mxu0
      %v987 = vadd.f32 0.0, %v986
      %v988 = vpop.f32.mrb[0].mxu0
      %v989 = vpop.f32.mrb[0].mxu0
      %v990 = vadd.f32 0.0, %v989
      %v991 = vpop.f32.mrb[0].mxu0
      %992 = vmatprep.mubr.bf16.mxu0 0
      %993 = vmatmul.mubr.bf16.gmra.mrb[0].mxu0 %v924
      %v994 = vpop.f32.mrb[0].mxu0
      %v995 = vadd.f32 0.0, %v994
      %v996 = vpop.f32.mrb[0].mxu0
      %v997 = vpop.f32.mrb[0].mxu0
      %v998 = vadd.f32 0.0, %v997
      %v999 = vpop.f32.mrb[0].mxu0
      %1000 = vmatprep.mubr.bf16.mxu0 0
      %1001 = vmatmul.mubr.bf16.gmra.mrb[0].mxu0 %v927
      %v1002 = vpop.f32.mrb[0].mxu0
      %v1003 = vadd.f32 0.0, %v1002
      %v1004 = vpop.f32.mrb[0].mxu0
      %v1005 = vpop.f32.mrb[0].mxu0
      %v1006 = vadd.f32 0.0, %v1005
      %v1007 = vpop.f32.mrb[0].mxu0
      %1008 = vmatprep.mubr.bf16.mxu0 0
      %1009 = vmatmul.mubr.bf16.gmra.mrb[0].mxu0 %v930
      %v1010 = vpop.f32.mrb[0].mxu0
      %v1011 = vadd.f32 0.0, %v1010
      %v1012 = vpop.f32.mrb[0].mxu0
      %v1013 = vpop.f32.mrb[0].mxu0
      %v1014 = vadd.f32 0.0, %v1013
      %v1015 = vpop.f32.mrb[0].mxu0
      %1016 = vmatprep.mubr.bf16.mxu0 0
      %1017 = vmatmul.mubr.bf16.gmra.mrb[0].mxu0 %v933
      %v1018 = vpop.f32.mrb[0].mxu0
      %v1019 = vadd.f32 0.0, %v1018
      %v1020 = vpop.f32.mrb[0].mxu0
      %v1021 = vpop.f32.mrb[0].mxu0
      %v1022 = vadd.f32 0.0, %v1021
      %v1023 = vpop.f32.mrb[0].mxu0
      %1024 = vmatprep.mubr.bf16.mxu0 0
      %1025 = vmatmul.mubr.bf16.gmra.mrb[0].mxu0 %v936
      %v1026 = vpop.f32.mrb[0].mxu0
      %v1027 = vadd.f32 0.0, %v1026
      %v1028 = vpop.f32.mrb[0].mxu0
      %v1029 = vpop.f32.mrb[0].mxu0
      %v1030 = vadd.f32 0.0, %v1029
      %v1031 = vpop.f32.mrb[0].mxu0
      %1032 = vmatprep.mubr.bf16.mxu0 0
      %1033 = vmatmul.mubr.bf16.gmra.mrb[0].mxu0 %v939
      %v1034 = vpop.f32.mrb[0].mxu0
      %v1035 = vadd.f32 0.0, %v1034
      %v1036 = vpop.f32.mrb[0].mxu0
      %v1037 = vpop.f32.mrb[0].mxu0
      %v1038 = vadd.f32 0.0, %v1037
      %v1039 = vpop.f32.mrb[0].mxu0
      %1040 = vdwg.mxu0
      %v1041 = vadd.f32 %v762, %v979
      %v1042 = vadd.f32 %v765, %v982
      %v1043 = vadd.f32 %v770, %v987
      %v1044 = vadd.f32 %v773, %v990
      %v1045 = vadd.f32 %v778, %v995
      %v1046 = vadd.f32 %v781, %v998
      %v1047 = vadd.f32 %v786, %v1003
      %v1048 = vadd.f32 %v789, %v1006
      %v1049 = vadd.f32 %v794, %v1011
      %v1050 = vadd.f32 %v797, %v1014
      %v1051 = vadd.f32 %v802, %v1019
      %v1052 = vadd.f32 %v805, %v1022
      %v1053 = vadd.f32 %v810, %v1027
      %v1054 = vadd.f32 %v813, %v1030
      %v1055 = vadd.f32 %v818, %v1035
      %v1056 = vadd.f32 %v821, %v1038
      %s1057 = sadd.s32 %s284, 1
      %s1058 = smul.u32 %s1057, 3
      %s1059 = smul.addr %s1058, 4
      %s1060 = scalar_lea.vmem %s258, %s1059
      %v1061 = vld [vmem:[%s1060] sm:$0xf]
      %v1062 = vld [vmem:[%s1060 + $0x4] sm:$0xf]
      %v1063 = vld [vmem:[%s1060 + $0x8] sm:$0x1]
      %v1064 = vld [vmem:[%s1060 + $0xc] sm:$0xf]
      %v1065 = vld [vmem:[%s1060 + $0x10] sm:$0xf]
      %v1066 = vld [vmem:[%s1060 + $0x14] sm:$0x1]
      %v1067 = vld [vmem:[%s1060 + $0x18] sm:$0xf]
      %v1068 = vld [vmem:[%s1060 + $0x1c] sm:$0xf]
      %v1069 = vld [vmem:[%s1060 + $0x20] sm:$0x1]
      %v1070 = vld [vmem:[%s1060 + $0x24] sm:$0xf]
      %v1071 = vld [vmem:[%s1060 + $0x28] sm:$0xf]
      %v1072 = vld [vmem:[%s1060 + $0x2c] sm:$0x1]
      %v1073 = vld [vmem:[%s1060 + $0x30] sm:$0xf]
      %v1074 = vld [vmem:[%s1060 + $0x34] sm:$0xf]
      %v1075 = vld [vmem:[%s1060 + $0x38] sm:$0x1]
      %v1076 = vld [vmem:[%s1060 + $0x3c] sm:$0xf]
      %v1077 = vld [vmem:[%s1060 + $0x40] sm:$0xf]
      %v1078 = vld [vmem:[%s1060 + $0x44] sm:$0x1]
      %v1079 = vld [vmem:[%s1060 + $0x48] sm:$0xf]
      %v1080 = vld [vmem:[%s1060 + $0x4c] sm:$0xf]
      %v1081 = vld [vmem:[%s1060 + $0x50] sm:$0x1]
      %v1082 = vld [vmem:[%s1060 + $0x54] sm:$0xf]
      %v1083 = vld [vmem:[%s1060 + $0x58] sm:$0xf]
      %v1084 = vld [vmem:[%s1060 + $0x5c] sm:$0x1]
      %s1085 = scalar_lea.vmem %s262, 6
      %v1086 = vld [vmem:[%s1085] sm:$0x3]
      %v1103 = vunpack.c.l.b16 %v1061
      %v1104 = vunpack.c.l.b16 %v1062
      %v1105 = vunpack.c.l.b16 %v1064
      %v1106 = vunpack.c.l.b16 %v1065
      %v1107 = vunpack.c.l.b16 %v1067
      %v1108 = vunpack.c.l.b16 %v1068
      %v1109 = vunpack.c.l.b16 %v1070
      %v1110 = vunpack.c.l.b16 %v1071
      %v1111 = vunpack.c.l.b16 %v1073
      %v1112 = vunpack.c.l.b16 %v1074
      %v1113 = vunpack.c.l.b16 %v1076
      %v1114 = vunpack.c.l.b16 %v1077
      %v1115 = vunpack.c.l.b16 %v1079
      %v1116 = vunpack.c.l.b16 %v1080
      %v1117 = vunpack.c.l.b16 %v1082
      %v1118 = vunpack.c.l.b16 %v1083
      %v1119 = vpack.c.b16 %v1104, %v1103
      %v1120 = vpack.c.b16 %v1106, %v1105
      %v1121 = vpack.c.b16 %v1108, %v1107
      %v1122 = vpack.c.b16 %v1110, %v1109
      %v1123 = vpack.c.b16 %v1112, %v1111
      %v1124 = vpack.c.b16 %v1114, %v1113
      %v1125 = vpack.c.b16 %v1116, %v1115
      %v1126 = vpack.c.b16 %v1118, %v1117
      %v1128 = vsel %vm534, %v1119, 0
      %v1131 = vsel %vm534, %v1120, 0
      %v1134 = vsel %vm534, %v1121, 0
      %v1137 = vsel %vm534, %v1122, 0
      %v1140 = vsel %vm534, %v1123, 0
      %v1143 = vsel %vm534, %v1124, 0
      %v1146 = vsel %vm534, %v1125, 0
      %v1149 = vsel %vm534, %v1126, 0
      %v1152 = vsel %vm559, %v1086, 0
      %1154 = vmatprep.subr.bf16.mxu0 0
      %1155 = vmatpush1.bf16.msra.mxu0 %v1152
      %1156 = vmatprep.subr.bf16.mxu0 0
      %1157 = vmatpush1.bf16.msra.mxu0 0
      %1158 = vmatprep.subr.bf16.mxu0 0
      %1159 = vmatpush1.bf16.msra.mxu0 0
      %1160 = vmatprep.subr.bf16.mxu0 0
      %1161 = vmatpush1.bf16.msra.mxu0 0
      %1162 = vmatprep.subr.bf16.mxu0 0
      %1163 = vmatpush1.bf16.msra.mxu0 0
      %1164 = vmatprep.subr.bf16.mxu0 0
      %1165 = vmatpush1.bf16.msra.mxu0 0
      %1166 = vmatprep.subr.bf16.mxu0 0
      %1167 = vmatpush1.bf16.msra.mxu0 0
      %1168 = vmatprep.subr.bf16.mxu0 0
      %1169 = vmatpush1.bf16.msra.mxu0 0
      %1170 = vmatprep.subr.bf16.mxu0 0
      %1171 = vmatpush1.bf16.msra.mxu0 0
      %1172 = vmatprep.subr.bf16.mxu0 0
      %1173 = vmatpush1.bf16.msra.mxu0 0
      %1174 = vmatprep.subr.bf16.mxu0 0
      %1175 = vmatpush1.bf16.msra.mxu0 0
      %1176 = vmatprep.subr.bf16.mxu0 0
      %1177 = vmatpush1.bf16.msra.mxu0 0
      %1178 = vmatprep.subr.bf16.mxu0 0
      %1179 = vmatpush1.bf16.msra.mxu0 0
      %1180 = vmatprep.subr.bf16.mxu0 0
      %1181 = vmatpush1.bf16.msra.mxu0 0
      %1182 = vmatprep.subr.bf16.mxu0 0
      %1183 = vmatpush1.bf16.msra.mxu0 0
      %1184 = vmatprep.subr.bf16.mxu0 0
      %1185 = vmatpush1.bf16.msra.mxu0 0
      %1186 = vmatprep.mubr.bf16.mxu0 0
      %1187 = vmatmul.mubr.bf16.gmra.mrb[0].mxu0 %v1128
      %v1188 = vpop.f32.mrb[0].mxu0
      %v1189 = vadd.f32 0.0, %v1188
      %v1190 = vpop.f32.mrb[0].mxu0
      %v1191 = vpop.f32.mrb[0].mxu0
      %v1192 = vadd.f32 0.0, %v1191
      %v1193 = vpop.f32.mrb[0].mxu0
      %1194 = vmatprep.mubr.bf16.mxu0 0
      %1195 = vmatmul.mubr.bf16.gmra.mrb[0].mxu0 %v1131
      %v1196 = vpop.f32.mrb[0].mxu0
      %v1197 = vadd.f32 0.0, %v1196
      %v1198 = vpop.f32.mrb[0].mxu0
      %v1199 = vpop.f32.mrb[0].mxu0
      %v1200 = vadd.f32 0.0, %v1199
      %v1201 = vpop.f32.mrb[0].mxu0
      %1202 = vmatprep.mubr.bf16.mxu0 0
      %1203 = vmatmul.mubr.bf16.gmra.mrb[0].mxu0 %v1134
      %v1204 = vpop.f32.mrb[0].mxu0
      %v1205 = vadd.f32 0.0, %v1204
      %v1206 = vpop.f32.mrb[0].mxu0
      %v1207 = vpop.f32.mrb[0].mxu0
      %v1208 = vadd.f32 0.0, %v1207
      %v1209 = vpop.f32.mrb[0].mxu0
      %1210 = vmatprep.mubr.bf16.mxu0 0
      %1211 = vmatmul.mubr.bf16.gmra.mrb[0].mxu0 %v1137
      %v1212 = vpop.f32.mrb[0].mxu0
      %v1213 = vadd.f32 0.0, %v1212
      %v1214 = vpop.f32.mrb[0].mxu0
      %v1215 = vpop.f32.mrb[0].mxu0
      %v1216 = vadd.f32 0.0, %v1215
      %v1217 = vpop.f32.mrb[0].mxu0
      %1218 = vmatprep.mubr.bf16.mxu0 0
      %1219 = vmatmul.mubr.bf16.gmra.mrb[0].mxu0 %v1140
      %v1220 = vpop.f32.mrb[0].mxu0
      %v1221 = vadd.f32 0.0, %v1220
      %v1222 = vpop.f32.mrb[0].mxu0
      %v1223 = vpop.f32.mrb[0].mxu0
      %v1224 = vadd.f32 0.0, %v1223
      %v1225 = vpop.f32.mrb[0].mxu0
      %1226 = vmatprep.mubr.bf16.mxu0 0
      %1227 = vmatmul.mubr.bf16.gmra.mrb[0].mxu0 %v1143
      %v1228 = vpop.f32.mrb[0].mxu0
      %v1229 = vadd.f32 0.0, %v1228
      %v1230 = vpop.f32.mrb[0].mxu0
      %v1231 = vpop.f32.mrb[0].mxu0
      %v1232 = vadd.f32 0.0, %v1231
      %v1233 = vpop.f32.mrb[0].mxu0
      %1234 = vmatprep.mubr.bf16.mxu0 0
      %1235 = vmatmul.mubr.bf16.gmra.mrb[0].mxu0 %v1146
      %v1236 = vpop.f32.mrb[0].mxu0
      %v1237 = vadd.f32 0.0, %v1236
      %v1238 = vpop.f32.mrb[0].mxu0
      %v1239 = vpop.f32.mrb[0].mxu0
      %v1240 = vadd.f32 0.0, %v1239
      %v1241 = vpop.f32.mrb[0].mxu0
      %1242 = vmatprep.mubr.bf16.mxu0 0
      %1243 = vmatmul.mubr.bf16.gmra.mrb[0].mxu0 %v1149
      %v1244 = vpop.f32.mrb[0].mxu0
      %v1245 = vadd.f32 0.0, %v1244
      %v1246 = vpop.f32.mrb[0].mxu0
      %v1247 = vpop.f32.mrb[0].mxu0
      %v1248 = vadd.f32 0.0, %v1247
      %v1249 = vpop.f32.mrb[0].mxu0
      %1250 = vdwg.mxu0
      %v1251 = vadd.f32 %v1041, %v1189
      %v1252 = vadd.f32 %v1042, %v1192
      %v1253 = vadd.f32 %v1043, %v1197
      %v1254 = vadd.f32 %v1044, %v1200
      %v1255 = vadd.f32 %v1045, %v1205
      %v1256 = vadd.f32 %v1046, %v1208
      %v1257 = vadd.f32 %v1047, %v1213
      %v1258 = vadd.f32 %v1048, %v1216
      %v1259 = vadd.f32 %v1049, %v1221
      %v1260 = vadd.f32 %v1050, %v1224
      %v1261 = vadd.f32 %v1051, %v1229
      %v1262 = vadd.f32 %v1052, %v1232
      %v1263 = vadd.f32 %v1053, %v1237
      %v1264 = vadd.f32 %v1054, %v1240
      %v1265 = vadd.f32 %v1055, %v1245
      %v1266 = vadd.f32 %v1056, %v1248
      %v1268 = vshrl.u32 %v1061, 16
      %v1270 = vrot.slane %v1268, 4
      %v1271 = vshll.u32 %v1061, 16
      %v1273 = vrot.slane %v1271, 5
      %v1274 = vor.u32 %v1270, %v1273
      %v1275 = vrot.slane %v1274, 4
      %v1277 = vshll.u32 %v1062, 16
      %v1279 = vrot.slane %v1277, 5
      %v1280 = vsel %vm315, %v1275, %v1279
      %v1281 = vshrl.u32 %v1062, 16
      %v1283 = vrot.slane %v1281, 4
      %v1284 = vor.u32 %v1283, %v1279
      %v1285 = vrot.slane %v1284, 4
      %v1287 = vshll.u32 %v1063, 16
      %v1289 = vrot.slane %v1287, 5
      %v1290 = vsel %vm315, %v1285, %v1289
      %v1292 = vshrl.u32 %v1064, 16
      %v1294 = vrot.slane %v1292, 4
      %v1295 = vshll.u32 %v1064, 16
      %v1297 = vrot.slane %v1295, 5
      %v1298 = vor.u32 %v1294, %v1297
      %v1299 = vrot.slane %v1298, 4
      %v1301 = vshll.u32 %v1065, 16
      %v1303 = vrot.slane %v1301, 5
      %v1304 = vsel %vm315, %v1299, %v1303
      %v1305 = vshrl.u32 %v1065, 16
      %v1307 = vrot.slane %v1305, 4
      %v1308 = vor.u32 %v1307, %v1303
      %v1309 = vrot.slane %v1308, 4
      %v1311 = vshll.u32 %v1066, 16
      %v1313 = vrot.slane %v1311, 5
      %v1314 = vsel %vm315, %v1309, %v1313
      %v1316 = vshrl.u32 %v1067, 16
      %v1318 = vrot.slane %v1316, 4
      %v1319 = vshll.u32 %v1067, 16
      %v1321 = vrot.slane %v1319, 5
      %v1322 = vor.u32 %v1318, %v1321
      %v1323 = vrot.slane %v1322, 4
      %v1325 = vshll.u32 %v1068, 16
      %v1327 = vrot.slane %v1325, 5
      %v1328 = vsel %vm315, %v1323, %v1327
      %v1329 = vshrl.u32 %v1068, 16
      %v1331 = vrot.slane %v1329, 4
      %v1332 = vor.u32 %v1331, %v1327
      %v1333 = vrot.slane %v1332, 4
      %v1335 = vshll.u32 %v1069, 16
      %v1337 = vrot.slane %v1335, 5
      %v1338 = vsel %vm315, %v1333, %v1337
      %v1340 = vshrl.u32 %v1070, 16
      %v1342 = vrot.slane %v1340, 4
      %v1343 = vshll.u32 %v1070, 16
      %v1345 = vrot.slane %v1343, 5
      %v1346 = vor.u32 %v1342, %v1345
      %v1347 = vrot.slane %v1346, 4
      %v1349 = vshll.u32 %v1071, 16
      %v1351 = vrot.slane %v1349, 5
      %v1352 = vsel %vm315, %v1347, %v1351
      %v1353 = vshrl.u32 %v1071, 16
      %v1355 = vrot.slane %v1353, 4
      %v1356 = vor.u32 %v1355, %v1351
      %v1357 = vrot.slane %v1356, 4
      %v1359 = vshll.u32 %v1072, 16
      %v1361 = vrot.slane %v1359, 5
      %v1362 = vsel %vm315, %v1357, %v1361
      %v1364 = vshrl.u32 %v1073, 16
      %v1366 = vrot.slane %v1364, 4
      %v1367 = vshll.u32 %v1073, 16
      %v1369 = vrot.slane %v1367, 5
      %v1370 = vor.u32 %v1366, %v1369
      %v1371 = vrot.slane %v1370, 4
      %v1373 = vshll.u32 %v1074, 16
      %v1375 = vrot.slane %v1373, 5
      %v1376 = vsel %vm315, %v1371, %v1375
      %v1377 = vshrl.u32 %v1074, 16
      %v1379 = vrot.slane %v1377, 4
      %v1380 = vor.u32 %v1379, %v1375
      %v1381 = vrot.slane %v1380, 4
      %v1383 = vshll.u32 %v1075, 16
      %v1385 = vrot.slane %v1383, 5
      %v1386 = vsel %vm315, %v1381, %v1385
      %v1388 = vshrl.u32 %v1076, 16
      %v1390 = vrot.slane %v1388, 4
      %v1391 = vshll.u32 %v1076, 16
      %v1393 = vrot.slane %v1391, 5
      %v1394 = vor.u32 %v1390, %v1393
      %v1395 = vrot.slane %v1394, 4
      %v1397 = vshll.u32 %v1077, 16
      %v1399 = vrot.slane %v1397, 5
      %v1400 = vsel %vm315, %v1395, %v1399
      %v1401 = vshrl.u32 %v1077, 16
      %v1403 = vrot.slane %v1401, 4
      %v1404 = vor.u32 %v1403, %v1399
      %v1405 = vrot.slane %v1404, 4
      %v1407 = vshll.u32 %v1078, 16
      %v1409 = vrot.slane %v1407, 5
      %v1410 = vsel %vm315, %v1405, %v1409
      %v1412 = vshrl.u32 %v1079, 16
      %v1414 = vrot.slane %v1412, 4
      %v1415 = vshll.u32 %v1079, 16
      %v1417 = vrot.slane %v1415, 5
      %v1418 = vor.u32 %v1414, %v1417
      %v1419 = vrot.slane %v1418, 4
      %v1421 = vshll.u32 %v1080, 16
      %v1423 = vrot.slane %v1421, 5
      %v1424 = vsel %vm315, %v1419, %v1423
      %v1425 = vshrl.u32 %v1080, 16
      %v1427 = vrot.slane %v1425, 4
      %v1428 = vor.u32 %v1427, %v1423
      %v1429 = vrot.slane %v1428, 4
      %v1431 = vshll.u32 %v1081, 16
      %v1433 = vrot.slane %v1431, 5
      %v1434 = vsel %vm315, %v1429, %v1433
      %v1436 = vshrl.u32 %v1082, 16
      %v1438 = vrot.slane %v1436, 4
      %v1439 = vshll.u32 %v1082, 16
      %v1441 = vrot.slane %v1439, 5
      %v1442 = vor.u32 %v1438, %v1441
      %v1443 = vrot.slane %v1442, 4
      %v1445 = vshll.u32 %v1083, 16
      %v1447 = vrot.slane %v1445, 5
      %v1448 = vsel %vm315, %v1443, %v1447
      %v1449 = vshrl.u32 %v1083, 16
      %v1451 = vrot.slane %v1449, 4
      %v1452 = vor.u32 %v1451, %v1447
      %v1453 = vrot.slane %v1452, 4
      %v1455 = vshll.u32 %v1084, 16
      %v1457 = vrot.slane %v1455, 5
      %v1458 = vsel %vm315, %v1453, %v1457
      %s1459 = scalar_lea.vmem %s262, 8
      %v1460 = vld [vmem:[%s1459] sm:$0x3]
      %v1461 = vunpack.c.l.b16 %v1280
      %v1462 = vunpack.c.l.b16 %v1290
      %v1463 = vunpack.c.l.b16 %v1304
      %v1464 = vunpack.c.l.b16 %v1314
      %v1465 = vunpack.c.l.b16 %v1328
      %v1466 = vunpack.c.l.b16 %v1338
      %v1467 = vunpack.c.l.b16 %v1352
      %v1468 = vunpack.c.l.b16 %v1362
      %v1469 = vunpack.c.l.b16 %v1376
      %v1470 = vunpack.c.l.b16 %v1386
      %v1471 = vunpack.c.l.b16 %v1400
      %v1472 = vunpack.c.l.b16 %v1410
      %v1473 = vunpack.c.l.b16 %v1424
      %v1474 = vunpack.c.l.b16 %v1434
      %v1475 = vunpack.c.l.b16 %v1448
      %v1476 = vunpack.c.l.b16 %v1458
      %v1477 = vpack.c.b16 %v1462, %v1461
      %v1478 = vpack.c.b16 %v1464, %v1463
      %v1479 = vpack.c.b16 %v1466, %v1465
      %v1480 = vpack.c.b16 %v1468, %v1467
      %v1481 = vpack.c.b16 %v1470, %v1469
      %v1482 = vpack.c.b16 %v1472, %v1471
      %v1483 = vpack.c.b16 %v1474, %v1473
      %v1484 = vpack.c.b16 %v1476, %v1475
      %v1486 = vsel %vm534, %v1477, 0
      %v1489 = vsel %vm534, %v1478, 0
      %v1492 = vsel %vm534, %v1479, 0
      %v1495 = vsel %vm534, %v1480, 0
      %v1498 = vsel %vm534, %v1481, 0
      %v1501 = vsel %vm534, %v1482, 0
      %v1504 = vsel %vm534, %v1483, 0
      %v1507 = vsel %vm534, %v1484, 0
      %v1510 = vsel %vm559, %v1460, 0
      %1512 = vmatprep.subr.bf16.mxu0 0
      %1513 = vmatpush1.bf16.msra.mxu0 %v1510
      %1514 = vmatprep.subr.bf16.mxu0 0
      %1515 = vmatpush1.bf16.msra.mxu0 0
      %1516 = vmatprep.subr.bf16.mxu0 0
      %1517 = vmatpush1.bf16.msra.mxu0 0
      %1518 = vmatprep.subr.bf16.mxu0 0
      %1519 = vmatpush1.bf16.msra.mxu0 0
      %1520 = vmatprep.subr.bf16.mxu0 0
      %1521 = vmatpush1.bf16.msra.mxu0 0
      %1522 = vmatprep.subr.bf16.mxu0 0
      %1523 = vmatpush1.bf16.msra.mxu0 0
      %1524 = vmatprep.subr.bf16.mxu0 0
      %1525 = vmatpush1.bf16.msra.mxu0 0
      %1526 = vmatprep.subr.bf16.mxu0 0
      %1527 = vmatpush1.bf16.msra.mxu0 0
      %1528 = vmatprep.subr.bf16.mxu0 0
      %1529 = vmatpush1.bf16.msra.mxu0 0
      %1530 = vmatprep.subr.bf16.mxu0 0
      %1531 = vmatpush1.bf16.msra.mxu0 0
      %1532 = vmatprep.subr.bf16.mxu0 0
      %1533 = vmatpush1.bf16.msra.mxu0 0
      %1534 = vmatprep.subr.bf16.mxu0 0
      %1535 = vmatpush1.bf16.msra.mxu0 0
      %1536 = vmatprep.subr.bf16.mxu0 0
      %1537 = vmatpush1.bf16.msra.mxu0 0
      %1538 = vmatprep.subr.bf16.mxu0 0
      %1539 = vmatpush1.bf16.msra.mxu0 0
      %1540 = vmatprep.subr.bf16.mxu0 0
      %1541 = vmatpush1.bf16.msra.mxu0 0
      %1542 = vmatprep.subr.bf16.mxu0 0
      %1543 = vmatpush1.bf16.msra.mxu0 0
      %1544 = vmatprep.mubr.bf16.mxu0 0
      %1545 = vmatmul.mubr.bf16.gmra.mrb[0].mxu0 %v1486
      %v1546 = vpop.f32.mrb[0].mxu0
      %v1547 = vadd.f32 0.0, %v1546
      %v1548 = vpop.f32.mrb[0].mxu0
      %v1549 = vpop.f32.mrb[0].mxu0
      %v1550 = vadd.f32 0.0, %v1549
      %v1551 = vpop.f32.mrb[0].mxu0
      %1552 = vmatprep.mubr.bf16.mxu0 0
      %1553 = vmatmul.mubr.bf16.gmra.mrb[0].mxu0 %v1489
      %v1554 = vpop.f32.mrb[0].mxu0
      %v1555 = vadd.f32 0.0, %v1554
      %v1556 = vpop.f32.mrb[0].mxu0
      %v1557 = vpop.f32.mrb[0].mxu0
      %v1558 = vadd.f32 0.0, %v1557
      %v1559 = vpop.f32.mrb[0].mxu0
      %1560 = vmatprep.mubr.bf16.mxu0 0
      %1561 = vmatmul.mubr.bf16.gmra.mrb[0].mxu0 %v1492
      %v1562 = vpop.f32.mrb[0].mxu0
      %v1563 = vadd.f32 0.0, %v1562
      %v1564 = vpop.f32.mrb[0].mxu0
      %v1565 = vpop.f32.mrb[0].mxu0
      %v1566 = vadd.f32 0.0, %v1565
      %v1567 = vpop.f32.mrb[0].mxu0
      %1568 = vmatprep.mubr.bf16.mxu0 0
      %1569 = vmatmul.mubr.bf16.gmra.mrb[0].mxu0 %v1495
      %v1570 = vpop.f32.mrb[0].mxu0
      %v1571 = vadd.f32 0.0, %v1570
      %v1572 = vpop.f32.mrb[0].mxu0
      %v1573 = vpop.f32.mrb[0].mxu0
      %v1574 = vadd.f32 0.0, %v1573
      %v1575 = vpop.f32.mrb[0].mxu0
      %1576 = vmatprep.mubr.bf16.mxu0 0
      %1577 = vmatmul.mubr.bf16.gmra.mrb[0].mxu0 %v1498
      %v1578 = vpop.f32.mrb[0].mxu0
      %v1579 = vadd.f32 0.0, %v1578
      %v1580 = vpop.f32.mrb[0].mxu0
      %v1581 = vpop.f32.mrb[0].mxu0
      %v1582 = vadd.f32 0.0, %v1581
      %v1583 = vpop.f32.mrb[0].mxu0
      %1584 = vmatprep.mubr.bf16.mxu0 0
      %1585 = vmatmul.mubr.bf16.gmra.mrb[0].mxu0 %v1501
      %v1586 = vpop.f32.mrb[0].mxu0
      %v1587 = vadd.f32 0.0, %v1586
      %v1588 = vpop.f32.mrb[0].mxu0
      %v1589 = vpop.f32.mrb[0].mxu0
      %v1590 = vadd.f32 0.0, %v1589
      %v1591 = vpop.f32.mrb[0].mxu0
      %1592 = vmatprep.mubr.bf16.mxu0 0
      %1593 = vmatmul.mubr.bf16.gmra.mrb[0].mxu0 %v1504
      %v1594 = vpop.f32.mrb[0].mxu0
      %v1595 = vadd.f32 0.0, %v1594
      %v1596 = vpop.f32.mrb[0].mxu0
      %v1597 = vpop.f32.mrb[0].mxu0
      %v1598 = vadd.f32 0.0, %v1597
      %v1599 = vpop.f32.mrb[0].mxu0
      %1600 = vmatprep.mubr.bf16.mxu0 0
      %1601 = vmatmul.mubr.bf16.gmra.mrb[0].mxu0 %v1507
      %v1602 = vpop.f32.mrb[0].mxu0
      %v1603 = vadd.f32 0.0, %v1602
      %v1604 = vpop.f32.mrb[0].mxu0
      %v1605 = vpop.f32.mrb[0].mxu0
      %v1606 = vadd.f32 0.0, %v1605
      %v1607 = vpop.f32.mrb[0].mxu0
      %1608 = vdwg.mxu0
      %v1609 = vadd.f32 %v1251, %v1547
      %v1610 = vadd.f32 %v1252, %v1550
      %v1611 = vadd.f32 %v1253, %v1555
      %v1612 = vadd.f32 %v1254, %v1558
      %v1613 = vadd.f32 %v1255, %v1563
      %v1614 = vadd.f32 %v1256, %v1566
      %v1615 = vadd.f32 %v1257, %v1571
      %v1616 = vadd.f32 %v1258, %v1574
      %v1617 = vadd.f32 %v1259, %v1579
      %v1618 = vadd.f32 %v1260, %v1582
      %v1619 = vadd.f32 %v1261, %v1587
      %v1620 = vadd.f32 %v1262, %v1590
      %v1621 = vadd.f32 %v1263, %v1595
      %v1622 = vadd.f32 %v1264, %v1598
      %v1623 = vadd.f32 %v1265, %v1603
      %v1624 = vadd.f32 %v1266, %v1606
      %v1633 = vrot.slane %v1061, 5
      %v1634 = vrot.slane %v1633, 4
      %v1635 = vrot.slane %v1062, 5
      %v1636 = vsel %vm834, %v1634, %v1635
      %v1637 = vrot.slane %v1635, 4
      %v1638 = vrot.slane %v1063, 5
      %v1639 = vsel %vm834, %v1637, %v1638
      %v1640 = vrot.slane %v1064, 5
      %v1641 = vrot.slane %v1640, 4
      %v1642 = vrot.slane %v1065, 5
      %v1643 = vsel %vm834, %v1641, %v1642
      %v1644 = vrot.slane %v1642, 4
      %v1645 = vrot.slane %v1066, 5
      %v1646 = vsel %vm834, %v1644, %v1645
      %v1647 = vrot.slane %v1067, 5
      %v1648 = vrot.slane %v1647, 4
      %v1649 = vrot.slane %v1068, 5
      %v1650 = vsel %vm834, %v1648, %v1649
      %v1651 = vrot.slane %v1649, 4
      %v1652 = vrot.slane %v1069, 5
      %v1653 = vsel %vm834, %v1651, %v1652
      %v1654 = vrot.slane %v1070, 5
      %v1655 = vrot.slane %v1654, 4
      %v1656 = vrot.slane %v1071, 5
      %v1657 = vsel %vm834, %v1655, %v1656
      %v1658 = vrot.slane %v1656, 4
      %v1659 = vrot.slane %v1072, 5
      %v1660 = vsel %vm834, %v1658, %v1659
      %v1661 = vrot.slane %v1073, 5
      %v1662 = vrot.slane %v1661, 4
      %v1663 = vrot.slane %v1074, 5
      %v1664 = vsel %vm834, %v1662, %v1663
      %v1665 = vrot.slane %v1663, 4
      %v1666 = vrot.slane %v1075, 5
      %v1667 = vsel %vm834, %v1665, %v1666
      %v1668 = vrot.slane %v1076, 5
      %v1669 = vrot.slane %v1668, 4
      %v1670 = vrot.slane %v1077, 5
      %v1671 = vsel %vm834, %v1669, %v1670
      %v1672 = vrot.slane %v1670, 4
      %v1673 = vrot.slane %v1078, 5
      %v1674 = vsel %vm834, %v1672, %v1673
      %v1675 = vrot.slane %v1079, 5
      %v1676 = vrot.slane %v1675, 4
      %v1677 = vrot.slane %v1080, 5
      %v1678 = vsel %vm834, %v1676, %v1677
      %v1679 = vrot.slane %v1677, 4
      %v1680 = vrot.slane %v1081, 5
      %v1681 = vsel %vm834, %v1679, %v1680
      %v1682 = vrot.slane %v1082, 5
      %v1683 = vrot.slane %v1682, 4
      %v1684 = vrot.slane %v1083, 5
      %v1685 = vsel %vm834, %v1683, %v1684
      %v1686 = vrot.slane %v1684, 4
      %v1687 = vrot.slane %v1084, 5
      %v1688 = vsel %vm834, %v1686, %v1687
      %s1689 = scalar_lea.vmem %s262, 10
      %v1690 = vld [vmem:[%s1689] sm:$0x3]
      %v1691 = vunpack.c.l.b16 %v1636
      %v1692 = vunpack.c.l.b16 %v1639
      %v1693 = vunpack.c.l.b16 %v1643
      %v1694 = vunpack.c.l.b16 %v1646
      %v1695 = vunpack.c.l.b16 %v1650
      %v1696 = vunpack.c.l.b16 %v1653
      %v1697 = vunpack.c.l.b16 %v1657
      %v1698 = vunpack.c.l.b16 %v1660
      %v1699 = vunpack.c.l.b16 %v1664
      %v1700 = vunpack.c.l.b16 %v1667
      %v1701 = vunpack.c.l.b16 %v1671
      %v1702 = vunpack.c.l.b16 %v1674
      %v1703 = vunpack.c.l.b16 %v1678
      %v1704 = vunpack.c.l.b16 %v1681
      %v1705 = vunpack.c.l.b16 %v1685
      %v1706 = vunpack.c.l.b16 %v1688
      %v1707 = vpack.c.b16 %v1692, %v1691
      %v1708 = vpack.c.b16 %v1694, %v1693
      %v1709 = vpack.c.b16 %v1696, %v1695
      %v1710 = vpack.c.b16 %v1698, %v1697
      %v1711 = vpack.c.b16 %v1700, %v1699
      %v1712 = vpack.c.b16 %v1702, %v1701
      %v1713 = vpack.c.b16 %v1704, %v1703
      %v1714 = vpack.c.b16 %v1706, %v1705
      %v1716 = vsel %vm534, %v1707, 0
      %v1719 = vsel %vm534, %v1708, 0
      %v1722 = vsel %vm534, %v1709, 0
      %v1725 = vsel %vm534, %v1710, 0
      %v1728 = vsel %vm534, %v1711, 0
      %v1731 = vsel %vm534, %v1712, 0
      %v1734 = vsel %vm534, %v1713, 0
      %v1737 = vsel %vm534, %v1714, 0
      %v1740 = vsel %vm559, %v1690, 0
      %1742 = vmatprep.subr.bf16.mxu0 0
      %1743 = vmatpush1.bf16.msra.mxu0 %v1740
      %1744 = vmatprep.subr.bf16.mxu0 0
      %1745 = vmatpush1.bf16.msra.mxu0 0
      %1746 = vmatprep.subr.bf16.mxu0 0
      %1747 = vmatpush1.bf16.msra.mxu0 0
      %1748 = vmatprep.subr.bf16.mxu0 0
      %1749 = vmatpush1.bf16.msra.mxu0 0
      %1750 = vmatprep.subr.bf16.mxu0 0
      %1751 = vmatpush1.bf16.msra.mxu0 0
      %1752 = vmatprep.subr.bf16.mxu0 0
      %1753 = vmatpush1.bf16.msra.mxu0 0
      %1754 = vmatprep.subr.bf16.mxu0 0
      %1755 = vmatpush1.bf16.msra.mxu0 0
      %1756 = vmatprep.subr.bf16.mxu0 0
      %1757 = vmatpush1.bf16.msra.mxu0 0
      %1758 = vmatprep.subr.bf16.mxu0 0
      %1759 = vmatpush1.bf16.msra.mxu0 0
      %1760 = vmatprep.subr.bf16.mxu0 0
      %1761 = vmatpush1.bf16.msra.mxu0 0
      %1762 = vmatprep.subr.bf16.mxu0 0
      %1763 = vmatpush1.bf16.msra.mxu0 0
      %1764 = vmatprep.subr.bf16.mxu0 0
      %1765 = vmatpush1.bf16.msra.mxu0 0
      %1766 = vmatprep.subr.bf16.mxu0 0
      %1767 = vmatpush1.bf16.msra.mxu0 0
      %1768 = vmatprep.subr.bf16.mxu0 0
      %1769 = vmatpush1.bf16.msra.mxu0 0
      %1770 = vmatprep.subr.bf16.mxu0 0
      %1771 = vmatpush1.bf16.msra.mxu0 0
      %1772 = vmatprep.subr.bf16.mxu0 0
      %1773 = vmatpush1.bf16.msra.mxu0 0
      %1774 = vmatprep.mubr.bf16.mxu0 0
      %1775 = vmatmul.mubr.bf16.gmra.mrb[0].mxu0 %v1716
      %v1776 = vpop.f32.mrb[0].mxu0
      %v1777 = vadd.f32 0.0, %v1776
      %v1778 = vpop.f32.mrb[0].mxu0
      %v1779 = vpop.f32.mrb[0].mxu0
      %v1780 = vadd.f32 0.0, %v1779
      %v1781 = vpop.f32.mrb[0].mxu0
      %1782 = vmatprep.mubr.bf16.mxu0 0
      %1783 = vmatmul.mubr.bf16.gmra.mrb[0].mxu0 %v1719
      %v1784 = vpop.f32.mrb[0].mxu0
      %v1785 = vadd.f32 0.0, %v1784
      %v1786 = vpop.f32.mrb[0].mxu0
      %v1787 = vpop.f32.mrb[0].mxu0
      %v1788 = vadd.f32 0.0, %v1787
      %v1789 = vpop.f32.mrb[0].mxu0
      %1790 = vmatprep.mubr.bf16.mxu0 0
      %1791 = vmatmul.mubr.bf16.gmra.mrb[0].mxu0 %v1722
      %v1792 = vpop.f32.mrb[0].mxu0
      %v1793 = vadd.f32 0.0, %v1792
      %v1794 = vpop.f32.mrb[0].mxu0
      %v1795 = vpop.f32.mrb[0].mxu0
      %v1796 = vadd.f32 0.0, %v1795
      %v1797 = vpop.f32.mrb[0].mxu0
      %1798 = vmatprep.mubr.bf16.mxu0 0
      %1799 = vmatmul.mubr.bf16.gmra.mrb[0].mxu0 %v1725
      %v1800 = vpop.f32.mrb[0].mxu0
      %v1801 = vadd.f32 0.0, %v1800
      %v1802 = vpop.f32.mrb[0].mxu0
      %v1803 = vpop.f32.mrb[0].mxu0
      %v1804 = vadd.f32 0.0, %v1803
      %v1805 = vpop.f32.mrb[0].mxu0
      %1806 = vmatprep.mubr.bf16.mxu0 0
      %1807 = vmatmul.mubr.bf16.gmra.mrb[0].mxu0 %v1728
      %v1808 = vpop.f32.mrb[0].mxu0
      %v1809 = vadd.f32 0.0, %v1808
      %v1810 = vpop.f32.mrb[0].mxu0
      %v1811 = vpop.f32.mrb[0].mxu0
      %v1812 = vadd.f32 0.0, %v1811
      %v1813 = vpop.f32.mrb[0].mxu0
      %1814 = vmatprep.mubr.bf16.mxu0 0
      %1815 = vmatmul.mubr.bf16.gmra.mrb[0].mxu0 %v1731
      %v1816 = vpop.f32.mrb[0].mxu0
      %v1817 = vadd.f32 0.0, %v1816
      %v1818 = vpop.f32.mrb[0].mxu0
      %v1819 = vpop.f32.mrb[0].mxu0
      %v1820 = vadd.f32 0.0, %v1819
      %v1821 = vpop.f32.mrb[0].mxu0
      %1822 = vmatprep.mubr.bf16.mxu0 0
      %1823 = vmatmul.mubr.bf16.gmra.mrb[0].mxu0 %v1734
      %v1824 = vpop.f32.mrb[0].mxu0
      %v1825 = vadd.f32 0.0, %v1824
      %v1826 = vpop.f32.mrb[0].mxu0
      %v1827 = vpop.f32.mrb[0].mxu0
      %v1828 = vadd.f32 0.0, %v1827
      %v1829 = vpop.f32.mrb[0].mxu0
      %1830 = vmatprep.mubr.bf16.mxu0 0
      %1831 = vmatmul.mubr.bf16.gmra.mrb[0].mxu0 %v1737
      %v1832 = vpop.f32.mrb[0].mxu0
      %v1833 = vadd.f32 0.0, %v1832
      %v1834 = vpop.f32.mrb[0].mxu0
      %v1835 = vpop.f32.mrb[0].mxu0
      %v1836 = vadd.f32 0.0, %v1835
      %v1837 = vpop.f32.mrb[0].mxu0
      %1838 = vdwg.mxu0
      %v1839 = vadd.f32 %v1609, %v1777
      %v1840 = vadd.f32 %v1610, %v1780
      %v1841 = vadd.f32 %v1611, %v1785
      %v1842 = vadd.f32 %v1612, %v1788
      %v1843 = vadd.f32 %v1613, %v1793
      %v1844 = vadd.f32 %v1614, %v1796
      %v1845 = vadd.f32 %v1615, %v1801
      %v1846 = vadd.f32 %v1616, %v1804
      %v1847 = vadd.f32 %v1617, %v1809
      %v1848 = vadd.f32 %v1618, %v1812
      %v1849 = vadd.f32 %v1619, %v1817
      %v1850 = vadd.f32 %v1620, %v1820
      %v1851 = vadd.f32 %v1621, %v1825
      %v1852 = vadd.f32 %v1622, %v1828
      %v1853 = vadd.f32 %v1623, %v1833
      %v1854 = vadd.f32 %v1624, %v1836
      %s1855 = sadd.s32 %s284, 2
      %s1856 = smul.u32 %s1855, 3
      %s1857 = smul.addr %s1856, 4
      %s1858 = scalar_lea.vmem %s258, %s1857
      %v1859 = vld [vmem:[%s1858] sm:$0xf]
      %v1860 = vld [vmem:[%s1858 + $0x4] sm:$0xf]
      %v1861 = vld [vmem:[%s1858 + $0x8] sm:$0x1]
      %v1862 = vld [vmem:[%s1858 + $0xc] sm:$0xf]
      %v1863 = vld [vmem:[%s1858 + $0x10] sm:$0xf]
      %v1864 = vld [vmem:[%s1858 + $0x14] sm:$0x1]
      %v1865 = vld [vmem:[%s1858 + $0x18] sm:$0xf]
      %v1866 = vld [vmem:[%s1858 + $0x1c] sm:$0xf]
      %v1867 = vld [vmem:[%s1858 + $0x20] sm:$0x1]
      %v1868 = vld [vmem:[%s1858 + $0x24] sm:$0xf]
      %v1869 = vld [vmem:[%s1858 + $0x28] sm:$0xf]
      %v1870 = vld [vmem:[%s1858 + $0x2c] sm:$0x1]
      %v1871 = vld [vmem:[%s1858 + $0x30] sm:$0xf]
      %v1872 = vld [vmem:[%s1858 + $0x34] sm:$0xf]
      %v1873 = vld [vmem:[%s1858 + $0x38] sm:$0x1]
      %v1874 = vld [vmem:[%s1858 + $0x3c] sm:$0xf]
      %v1875 = vld [vmem:[%s1858 + $0x40] sm:$0xf]
      %v1876 = vld [vmem:[%s1858 + $0x44] sm:$0x1]
      %v1877 = vld [vmem:[%s1858 + $0x48] sm:$0xf]
      %v1878 = vld [vmem:[%s1858 + $0x4c] sm:$0xf]
      %v1879 = vld [vmem:[%s1858 + $0x50] sm:$0x1]
      %v1880 = vld [vmem:[%s1858 + $0x54] sm:$0xf]
      %v1881 = vld [vmem:[%s1858 + $0x58] sm:$0xf]
      %v1882 = vld [vmem:[%s1858 + $0x5c] sm:$0x1]
      %s1883 = scalar_lea.vmem %s262, 12
      %v1884 = vld [vmem:[%s1883] sm:$0x3]
      %v1901 = vunpack.c.l.b16 %v1859
      %v1902 = vunpack.c.l.b16 %v1860
      %v1903 = vunpack.c.l.b16 %v1862
      %v1904 = vunpack.c.l.b16 %v1863
      %v1905 = vunpack.c.l.b16 %v1865
      %v1906 = vunpack.c.l.b16 %v1866
      %v1907 = vunpack.c.l.b16 %v1868
      %v1908 = vunpack.c.l.b16 %v1869
      %v1909 = vunpack.c.l.b16 %v1871
      %v1910 = vunpack.c.l.b16 %v1872
      %v1911 = vunpack.c.l.b16 %v1874
      %v1912 = vunpack.c.l.b16 %v1875
      %v1913 = vunpack.c.l.b16 %v1877
      %v1914 = vunpack.c.l.b16 %v1878
      %v1915 = vunpack.c.l.b16 %v1880
      %v1916 = vunpack.c.l.b16 %v1881
      %v1917 = vpack.c.b16 %v1902, %v1901
      %v1918 = vpack.c.b16 %v1904, %v1903
      %v1919 = vpack.c.b16 %v1906, %v1905
      %v1920 = vpack.c.b16 %v1908, %v1907
      %v1921 = vpack.c.b16 %v1910, %v1909
      %v1922 = vpack.c.b16 %v1912, %v1911
      %v1923 = vpack.c.b16 %v1914, %v1913
      %v1924 = vpack.c.b16 %v1916, %v1915
      %v1926 = vsel %vm534, %v1917, 0
      %v1929 = vsel %vm534, %v1918, 0
      %v1932 = vsel %vm534, %v1919, 0
      %v1935 = vsel %vm534, %v1920, 0
      %v1938 = vsel %vm534, %v1921, 0
      %v1941 = vsel %vm534, %v1922, 0
      %v1944 = vsel %vm534, %v1923, 0
      %v1947 = vsel %vm534, %v1924, 0
      %v1950 = vsel %vm559, %v1884, 0
      %1952 = vmatprep.subr.bf16.mxu0 0
      %1953 = vmatpush1.bf16.msra.mxu0 %v1950
      %1954 = vmatprep.subr.bf16.mxu0 0
      %1955 = vmatpush1.bf16.msra.mxu0 0
      %1956 = vmatprep.subr.bf16.mxu0 0
      %1957 = vmatpush1.bf16.msra.mxu0 0
      %1958 = vmatprep.subr.bf16.mxu0 0
      %1959 = vmatpush1.bf16.msra.mxu0 0
      %1960 = vmatprep.subr.bf16.mxu0 0
      %1961 = vmatpush1.bf16.msra.mxu0 0
      %1962 = vmatprep.subr.bf16.mxu0 0
      %1963 = vmatpush1.bf16.msra.mxu0 0
      %1964 = vmatprep.subr.bf16.mxu0 0
      %1965 = vmatpush1.bf16.msra.mxu0 0
      %1966 = vmatprep.subr.bf16.mxu0 0
      %1967 = vmatpush1.bf16.msra.mxu0 0
      %1968 = vmatprep.subr.bf16.mxu0 0
      %1969 = vmatpush1.bf16.msra.mxu0 0
      %1970 = vmatprep.subr.bf16.mxu0 0
      %1971 = vmatpush1.bf16.msra.mxu0 0
      %1972 = vmatprep.subr.bf16.mxu0 0
      %1973 = vmatpush1.bf16.msra.mxu0 0
      %1974 = vmatprep.subr.bf16.mxu0 0
      %1975 = vmatpush1.bf16.msra.mxu0 0
      %1976 = vmatprep.subr.bf16.mxu0 0
      %1977 = vmatpush1.bf16.msra.mxu0 0
      %1978 = vmatprep.subr.bf16.mxu0 0
      %1979 = vmatpush1.bf16.msra.mxu0 0
      %1980 = vmatprep.subr.bf16.mxu0 0
      %1981 = vmatpush1.bf16.msra.mxu0 0
      %1982 = vmatprep.subr.bf16.mxu0 0
      %1983 = vmatpush1.bf16.msra.mxu0 0
      %1984 = vmatprep.mubr.bf16.mxu0 0
      %1985 = vmatmul.mubr.bf16.gmra.mrb[0].mxu0 %v1926
      %v1986 = vpop.f32.mrb[0].mxu0
      %v1987 = vadd.f32 0.0, %v1986
      %v1988 = vpop.f32.mrb[0].mxu0
      %v1989 = vpop.f32.mrb[0].mxu0
      %v1990 = vadd.f32 0.0, %v1989
      %v1991 = vpop.f32.mrb[0].mxu0
      %1992 = vmatprep.mubr.bf16.mxu0 0
      %1993 = vmatmul.mubr.bf16.gmra.mrb[0].mxu0 %v1929
      %v1994 = vpop.f32.mrb[0].mxu0
      %v1995 = vadd.f32 0.0, %v1994
      %v1996 = vpop.f32.mrb[0].mxu0
      %v1997 = vpop.f32.mrb[0].mxu0
      %v1998 = vadd.f32 0.0, %v1997
      %v1999 = vpop.f32.mrb[0].mxu0
      %2000 = vmatprep.mubr.bf16.mxu0 0
      %2001 = vmatmul.mubr.bf16.gmra.mrb[0].mxu0 %v1932
      %v2002 = vpop.f32.mrb[0].mxu0
      %v2003 = vadd.f32 0.0, %v2002
      %v2004 = vpop.f32.mrb[0].mxu0
      %v2005 = vpop.f32.mrb[0].mxu0
      %v2006 = vadd.f32 0.0, %v2005
      %v2007 = vpop.f32.mrb[0].mxu0
      %2008 = vmatprep.mubr.bf16.mxu0 0
      %2009 = vmatmul.mubr.bf16.gmra.mrb[0].mxu0 %v1935
      %v2010 = vpop.f32.mrb[0].mxu0
      %v2011 = vadd.f32 0.0, %v2010
      %v2012 = vpop.f32.mrb[0].mxu0
      %v2013 = vpop.f32.mrb[0].mxu0
      %v2014 = vadd.f32 0.0, %v2013
      %v2015 = vpop.f32.mrb[0].mxu0
      %2016 = vmatprep.mubr.bf16.mxu0 0
      %2017 = vmatmul.mubr.bf16.gmra.mrb[0].mxu0 %v1938
      %v2018 = vpop.f32.mrb[0].mxu0
      %v2019 = vadd.f32 0.0, %v2018
      %v2020 = vpop.f32.mrb[0].mxu0
      %v2021 = vpop.f32.mrb[0].mxu0
      %v2022 = vadd.f32 0.0, %v2021
      %v2023 = vpop.f32.mrb[0].mxu0
      %2024 = vmatprep.mubr.bf16.mxu0 0
      %2025 = vmatmul.mubr.bf16.gmra.mrb[0].mxu0 %v1941
      %v2026 = vpop.f32.mrb[0].mxu0
      %v2027 = vadd.f32 0.0, %v2026
      %v2028 = vpop.f32.mrb[0].mxu0
      %v2029 = vpop.f32.mrb[0].mxu0
      %v2030 = vadd.f32 0.0, %v2029
      %v2031 = vpop.f32.mrb[0].mxu0
      %2032 = vmatprep.mubr.bf16.mxu0 0
      %2033 = vmatmul.mubr.bf16.gmra.mrb[0].mxu0 %v1944
      %v2034 = vpop.f32.mrb[0].mxu0
      %v2035 = vadd.f32 0.0, %v2034
      %v2036 = vpop.f32.mrb[0].mxu0
      %v2037 = vpop.f32.mrb[0].mxu0
      %v2038 = vadd.f32 0.0, %v2037
      %v2039 = vpop.f32.mrb[0].mxu0
      %2040 = vmatprep.mubr.bf16.mxu0 0
      %2041 = vmatmul.mubr.bf16.gmra.mrb[0].mxu0 %v1947
      %v2042 = vpop.f32.mrb[0].mxu0
      %v2043 = vadd.f32 0.0, %v2042
      %v2044 = vpop.f32.mrb[0].mxu0
      %v2045 = vpop.f32.mrb[0].mxu0
      %v2046 = vadd.f32 0.0, %v2045
      %v2047 = vpop.f32.mrb[0].mxu0
      %2048 = vdwg.mxu0
      %v2049 = vadd.f32 %v1839, %v1987
      %v2050 = vadd.f32 %v1840, %v1990
      %v2051 = vadd.f32 %v1841, %v1995
      %v2052 = vadd.f32 %v1842, %v1998
      %v2053 = vadd.f32 %v1843, %v2003
      %v2054 = vadd.f32 %v1844, %v2006
      %v2055 = vadd.f32 %v1845, %v2011
      %v2056 = vadd.f32 %v1846, %v2014
      %v2057 = vadd.f32 %v1847, %v2019
      %v2058 = vadd.f32 %v1848, %v2022
      %v2059 = vadd.f32 %v1849, %v2027
      %v2060 = vadd.f32 %v1850, %v2030
      %v2061 = vadd.f32 %v1851, %v2035
      %v2062 = vadd.f32 %v1852, %v2038
      %v2063 = vadd.f32 %v1853, %v2043
      %v2064 = vadd.f32 %v1854, %v2046
      %v2066 = vshrl.u32 %v1859, 16
      %v2068 = vrot.slane %v2066, 4
      %v2069 = vshll.u32 %v1859, 16
      %v2071 = vrot.slane %v2069, 5
      %v2072 = vor.u32 %v2068, %v2071
      %v2073 = vrot.slane %v2072, 4
      %v2075 = vshll.u32 %v1860, 16
      %v2077 = vrot.slane %v2075, 5
      %v2078 = vsel %vm315, %v2073, %v2077
      %v2079 = vshrl.u32 %v1860, 16
      %v2081 = vrot.slane %v2079, 4
      %v2082 = vor.u32 %v2081, %v2077
      %v2083 = vrot.slane %v2082, 4
      %v2085 = vshll.u32 %v1861, 16
      %v2087 = vrot.slane %v2085, 5
      %v2088 = vsel %vm315, %v2083, %v2087
      %v2090 = vshrl.u32 %v1862, 16
      %v2092 = vrot.slane %v2090, 4
      %v2093 = vshll.u32 %v1862, 16
      %v2095 = vrot.slane %v2093, 5
      %v2096 = vor.u32 %v2092, %v2095
      %v2097 = vrot.slane %v2096, 4
      %v2099 = vshll.u32 %v1863, 16
      %v2101 = vrot.slane %v2099, 5
      %v2102 = vsel %vm315, %v2097, %v2101
      %v2103 = vshrl.u32 %v1863, 16
      %v2105 = vrot.slane %v2103, 4
      %v2106 = vor.u32 %v2105, %v2101
      %v2107 = vrot.slane %v2106, 4
      %v2109 = vshll.u32 %v1864, 16
      %v2111 = vrot.slane %v2109, 5
      %v2112 = vsel %vm315, %v2107, %v2111
      %v2114 = vshrl.u32 %v1865, 16
      %v2116 = vrot.slane %v2114, 4
      %v2117 = vshll.u32 %v1865, 16
      %v2119 = vrot.slane %v2117, 5
      %v2120 = vor.u32 %v2116, %v2119
      %v2121 = vrot.slane %v2120, 4
      %v2123 = vshll.u32 %v1866, 16
      %v2125 = vrot.slane %v2123, 5
      %v2126 = vsel %vm315, %v2121, %v2125
      %v2127 = vshrl.u32 %v1866, 16
      %v2129 = vrot.slane %v2127, 4
      %v2130 = vor.u32 %v2129, %v2125
      %v2131 = vrot.slane %v2130, 4
      %v2133 = vshll.u32 %v1867, 16
      %v2135 = vrot.slane %v2133, 5
      %v2136 = vsel %vm315, %v2131, %v2135
      %v2138 = vshrl.u32 %v1868, 16
      %v2140 = vrot.slane %v2138, 4
      %v2141 = vshll.u32 %v1868, 16
      %v2143 = vrot.slane %v2141, 5
      %v2144 = vor.u32 %v2140, %v2143
      %v2145 = vrot.slane %v2144, 4
      %v2147 = vshll.u32 %v1869, 16
      %v2149 = vrot.slane %v2147, 5
      %v2150 = vsel %vm315, %v2145, %v2149
      %v2151 = vshrl.u32 %v1869, 16
      %v2153 = vrot.slane %v2151, 4
      %v2154 = vor.u32 %v2153, %v2149
      %v2155 = vrot.slane %v2154, 4
      %v2157 = vshll.u32 %v1870, 16
      %v2159 = vrot.slane %v2157, 5
      %v2160 = vsel %vm315, %v2155, %v2159
      %v2162 = vshrl.u32 %v1871, 16
      %v2164 = vrot.slane %v2162, 4
      %v2165 = vshll.u32 %v1871, 16
      %v2167 = vrot.slane %v2165, 5
      %v2168 = vor.u32 %v2164, %v2167
      %v2169 = vrot.slane %v2168, 4
      %v2171 = vshll.u32 %v1872, 16
      %v2173 = vrot.slane %v2171, 5
      %v2174 = vsel %vm315, %v2169, %v2173
      %v2175 = vshrl.u32 %v1872, 16
      %v2177 = vrot.slane %v2175, 4
      %v2178 = vor.u32 %v2177, %v2173
      %v2179 = vrot.slane %v2178, 4
      %v2181 = vshll.u32 %v1873, 16
      %v2183 = vrot.slane %v2181, 5
      %v2184 = vsel %vm315, %v2179, %v2183
      %v2186 = vshrl.u32 %v1874, 16
      %v2188 = vrot.slane %v2186, 4
      %v2189 = vshll.u32 %v1874, 16
      %v2191 = vrot.slane %v2189, 5
      %v2192 = vor.u32 %v2188, %v2191
      %v2193 = vrot.slane %v2192, 4
      %v2195 = vshll.u32 %v1875, 16
      %v2197 = vrot.slane %v2195, 5
      %v2198 = vsel %vm315, %v2193, %v2197
      %v2199 = vshrl.u32 %v1875, 16
      %v2201 = vrot.slane %v2199, 4
      %v2202 = vor.u32 %v2201, %v2197
      %v2203 = vrot.slane %v2202, 4
      %v2205 = vshll.u32 %v1876, 16
      %v2207 = vrot.slane %v2205, 5
      %v2208 = vsel %vm315, %v2203, %v2207
      %v2210 = vshrl.u32 %v1877, 16
      %v2212 = vrot.slane %v2210, 4
      %v2213 = vshll.u32 %v1877, 16
      %v2215 = vrot.slane %v2213, 5
      %v2216 = vor.u32 %v2212, %v2215
      %v2217 = vrot.slane %v2216, 4
      %v2219 = vshll.u32 %v1878, 16
      %v2221 = vrot.slane %v2219, 5
      %v2222 = vsel %vm315, %v2217, %v2221
      %v2223 = vshrl.u32 %v1878, 16
      %v2225 = vrot.slane %v2223, 4
      %v2226 = vor.u32 %v2225, %v2221
      %v2227 = vrot.slane %v2226, 4
      %v2229 = vshll.u32 %v1879, 16
      %v2231 = vrot.slane %v2229, 5
      %v2232 = vsel %vm315, %v2227, %v2231
      %v2234 = vshrl.u32 %v1880, 16
      %v2236 = vrot.slane %v2234, 4
      %v2237 = vshll.u32 %v1880, 16
      %v2239 = vrot.slane %v2237, 5
      %v2240 = vor.u32 %v2236, %v2239
      %v2241 = vrot.slane %v2240, 4
      %v2243 = vshll.u32 %v1881, 16
      %v2245 = vrot.slane %v2243, 5
      %v2246 = vsel %vm315, %v2241, %v2245
      %v2247 = vshrl.u32 %v1881, 16
      %v2249 = vrot.slane %v2247, 4
      %v2250 = vor.u32 %v2249, %v2245
      %v2251 = vrot.slane %v2250, 4
      %v2253 = vshll.u32 %v1882, 16
      %v2255 = vrot.slane %v2253, 5
      %v2256 = vsel %vm315, %v2251, %v2255
      %s2257 = scalar_lea.vmem %s262, 14
      %v2258 = vld [vmem:[%s2257] sm:$0x3]
      %v2259 = vunpack.c.l.b16 %v2078
      %v2260 = vunpack.c.l.b16 %v2088
      %v2261 = vunpack.c.l.b16 %v2102
      %v2262 = vunpack.c.l.b16 %v2112
      %v2263 = vunpack.c.l.b16 %v2126
      %v2264 = vunpack.c.l.b16 %v2136
      %v2265 = vunpack.c.l.b16 %v2150
      %v2266 = vunpack.c.l.b16 %v2160
      %v2267 = vunpack.c.l.b16 %v2174
      %v2268 = vunpack.c.l.b16 %v2184
      %v2269 = vunpack.c.l.b16 %v2198
      %v2270 = vunpack.c.l.b16 %v2208
      %v2271 = vunpack.c.l.b16 %v2222
      %v2272 = vunpack.c.l.b16 %v2232
      %v2273 = vunpack.c.l.b16 %v2246
      %v2274 = vunpack.c.l.b16 %v2256
      %v2275 = vpack.c.b16 %v2260, %v2259
      %v2276 = vpack.c.b16 %v2262, %v2261
      %v2277 = vpack.c.b16 %v2264, %v2263
      %v2278 = vpack.c.b16 %v2266, %v2265
      %v2279 = vpack.c.b16 %v2268, %v2267
      %v2280 = vpack.c.b16 %v2270, %v2269
      %v2281 = vpack.c.b16 %v2272, %v2271
      %v2282 = vpack.c.b16 %v2274, %v2273
      %v2284 = vsel %vm534, %v2275, 0
      %v2287 = vsel %vm534, %v2276, 0
      %v2290 = vsel %vm534, %v2277, 0
      %v2293 = vsel %vm534, %v2278, 0
      %v2296 = vsel %vm534, %v2279, 0
      %v2299 = vsel %vm534, %v2280, 0
      %v2302 = vsel %vm534, %v2281, 0
      %v2305 = vsel %vm534, %v2282, 0
      %v2308 = vsel %vm559, %v2258, 0
      %2310 = vmatprep.subr.bf16.mxu0 0
      %2311 = vmatpush1.bf16.msra.mxu0 %v2308
      %2312 = vmatprep.subr.bf16.mxu0 0
      %2313 = vmatpush1.bf16.msra.mxu0 0
      %2314 = vmatprep.subr.bf16.mxu0 0
      %2315 = vmatpush1.bf16.msra.mxu0 0
      %2316 = vmatprep.subr.bf16.mxu0 0
      %2317 = vmatpush1.bf16.msra.mxu0 0
      %2318 = vmatprep.subr.bf16.mxu0 0
      %2319 = vmatpush1.bf16.msra.mxu0 0
      %2320 = vmatprep.subr.bf16.mxu0 0
      %2321 = vmatpush1.bf16.msra.mxu0 0
      %2322 = vmatprep.subr.bf16.mxu0 0
      %2323 = vmatpush1.bf16.msra.mxu0 0
      %2324 = vmatprep.subr.bf16.mxu0 0
      %2325 = vmatpush1.bf16.msra.mxu0 0
      %2326 = vmatprep.subr.bf16.mxu0 0
      %2327 = vmatpush1.bf16.msra.mxu0 0
      %2328 = vmatprep.subr.bf16.mxu0 0
      %2329 = vmatpush1.bf16.msra.mxu0 0
      %2330 = vmatprep.subr.bf16.mxu0 0
      %2331 = vmatpush1.bf16.msra.mxu0 0
      %2332 = vmatprep.subr.bf16.mxu0 0
      %2333 = vmatpush1.bf16.msra.mxu0 0
      %2334 = vmatprep.subr.bf16.mxu0 0
      %2335 = vmatpush1.bf16.msra.mxu0 0
      %2336 = vmatprep.subr.bf16.mxu0 0
      %2337 = vmatpush1.bf16.msra.mxu0 0
      %2338 = vmatprep.subr.bf16.mxu0 0
      %2339 = vmatpush1.bf16.msra.mxu0 0
      %2340 = vmatprep.subr.bf16.mxu0 0
      %2341 = vmatpush1.bf16.msra.mxu0 0
      %2342 = vmatprep.mubr.bf16.mxu0 0
      %2343 = vmatmul.mubr.bf16.gmra.mrb[0].mxu0 %v2284
      %v2344 = vpop.f32.mrb[0].mxu0
      %v2345 = vadd.f32 0.0, %v2344
      %v2346 = vpop.f32.mrb[0].mxu0
      %v2347 = vpop.f32.mrb[0].mxu0
      %v2348 = vadd.f32 0.0, %v2347
      %v2349 = vpop.f32.mrb[0].mxu0
      %2350 = vmatprep.mubr.bf16.mxu0 0
      %2351 = vmatmul.mubr.bf16.gmra.mrb[0].mxu0 %v2287
      %v2352 = vpop.f32.mrb[0].mxu0
      %v2353 = vadd.f32 0.0, %v2352
      %v2354 = vpop.f32.mrb[0].mxu0
      %v2355 = vpop.f32.mrb[0].mxu0
      %v2356 = vadd.f32 0.0, %v2355
      %v2357 = vpop.f32.mrb[0].mxu0
      %2358 = vmatprep.mubr.bf16.mxu0 0
      %2359 = vmatmul.mubr.bf16.gmra.mrb[0].mxu0 %v2290
      %v2360 = vpop.f32.mrb[0].mxu0
      %v2361 = vadd.f32 0.0, %v2360
      %v2362 = vpop.f32.mrb[0].mxu0
      %v2363 = vpop.f32.mrb[0].mxu0
      %v2364 = vadd.f32 0.0, %v2363
      %v2365 = vpop.f32.mrb[0].mxu0
      %2366 = vmatprep.mubr.bf16.mxu0 0
      %2367 = vmatmul.mubr.bf16.gmra.mrb[0].mxu0 %v2293
      %v2368 = vpop.f32.mrb[0].mxu0
      %v2369 = vadd.f32 0.0, %v2368
      %v2370 = vpop.f32.mrb[0].mxu0
      %v2371 = vpop.f32.mrb[0].mxu0
      %v2372 = vadd.f32 0.0, %v2371
      %v2373 = vpop.f32.mrb[0].mxu0
      %2374 = vmatprep.mubr.bf16.mxu0 0
      %2375 = vmatmul.mubr.bf16.gmra.mrb[0].mxu0 %v2296
      %v2376 = vpop.f32.mrb[0].mxu0
      %v2377 = vadd.f32 0.0, %v2376
      %v2378 = vpop.f32.mrb[0].mxu0
      %v2379 = vpop.f32.mrb[0].mxu0
      %v2380 = vadd.f32 0.0, %v2379
      %v2381 = vpop.f32.mrb[0].mxu0
      %2382 = vmatprep.mubr.bf16.mxu0 0
      %2383 = vmatmul.mubr.bf16.gmra.mrb[0].mxu0 %v2299
      %v2384 = vpop.f32.mrb[0].mxu0
      %v2385 = vadd.f32 0.0, %v2384
      %v2386 = vpop.f32.mrb[0].mxu0
      %v2387 = vpop.f32.mrb[0].mxu0
      %v2388 = vadd.f32 0.0, %v2387
      %v2389 = vpop.f32.mrb[0].mxu0
      %2390 = vmatprep.mubr.bf16.mxu0 0
      %2391 = vmatmul.mubr.bf16.gmra.mrb[0].mxu0 %v2302
      %v2392 = vpop.f32.mrb[0].mxu0
      %v2393 = vadd.f32 0.0, %v2392
      %v2394 = vpop.f32.mrb[0].mxu0
      %v2395 = vpop.f32.mrb[0].mxu0
      %v2396 = vadd.f32 0.0, %v2395
      %v2397 = vpop.f32.mrb[0].mxu0
      %2398 = vmatprep.mubr.bf16.mxu0 0
      %2399 = vmatmul.mubr.bf16.gmra.mrb[0].mxu0 %v2305
      %v2400 = vpop.f32.mrb[0].mxu0
      %v2401 = vadd.f32 0.0, %v2400
      %v2402 = vpop.f32.mrb[0].mxu0
      %v2403 = vpop.f32.mrb[0].mxu0
      %v2404 = vadd.f32 0.0, %v2403
      %v2405 = vpop.f32.mrb[0].mxu0
      %2406 = vdwg.mxu0
      %v2407 = vadd.f32 %v2049, %v2345
      %v2408 = vadd.f32 %v2050, %v2348
      %v2409 = vadd.f32 %v2051, %v2353
      %v2410 = vadd.f32 %v2052, %v2356
      %v2411 = vadd.f32 %v2053, %v2361
      %v2412 = vadd.f32 %v2054, %v2364
      %v2413 = vadd.f32 %v2055, %v2369
      %v2414 = vadd.f32 %v2056, %v2372
      %v2415 = vadd.f32 %v2057, %v2377
      %v2416 = vadd.f32 %v2058, %v2380
      %v2417 = vadd.f32 %v2059, %v2385
      %v2418 = vadd.f32 %v2060, %v2388
      %v2419 = vadd.f32 %v2061, %v2393
      %v2420 = vadd.f32 %v2062, %v2396
      %v2421 = vadd.f32 %v2063, %v2401
      %v2422 = vadd.f32 %v2064, %v2404
      %v2431 = vrot.slane %v1859, 5
      %v2432 = vrot.slane %v2431, 4
      %v2433 = vrot.slane %v1860, 5
      %v2434 = vsel %vm834, %v2432, %v2433
      %v2435 = vrot.slane %v2433, 4
      %v2436 = vrot.slane %v1861, 5
      %v2437 = vsel %vm834, %v2435, %v2436
      %v2438 = vrot.slane %v1862, 5
      %v2439 = vrot.slane %v2438, 4
      %v2440 = vrot.slane %v1863, 5
      %v2441 = vsel %vm834, %v2439, %v2440
      %v2442 = vrot.slane %v2440, 4
      %v2443 = vrot.slane %v1864, 5
      %v2444 = vsel %vm834, %v2442, %v2443
      %v2445 = vrot.slane %v1865, 5
      %v2446 = vrot.slane %v2445, 4
      %v2447 = vrot.slane %v1866, 5
      %v2448 = vsel %vm834, %v2446, %v2447
      %v2449 = vrot.slane %v2447, 4
      %v2450 = vrot.slane %v1867, 5
      %v2451 = vsel %vm834, %v2449, %v2450
      %v2452 = vrot.slane %v1868, 5
      %v2453 = vrot.slane %v2452, 4
      %v2454 = vrot.slane %v1869, 5
      %v2455 = vsel %vm834, %v2453, %v2454
      %v2456 = vrot.slane %v2454, 4
      %v2457 = vrot.slane %v1870, 5
      %v2458 = vsel %vm834, %v2456, %v2457
      %v2459 = vrot.slane %v1871, 5
      %v2460 = vrot.slane %v2459, 4
      %v2461 = vrot.slane %v1872, 5
      %v2462 = vsel %vm834, %v2460, %v2461
      %v2463 = vrot.slane %v2461, 4
      %v2464 = vrot.slane %v1873, 5
      %v2465 = vsel %vm834, %v2463, %v2464
      %v2466 = vrot.slane %v1874, 5
      %v2467 = vrot.slane %v2466, 4
      %v2468 = vrot.slane %v1875, 5
      %v2469 = vsel %vm834, %v2467, %v2468
      %v2470 = vrot.slane %v2468, 4
      %v2471 = vrot.slane %v1876, 5
      %v2472 = vsel %vm834, %v2470, %v2471
      %v2473 = vrot.slane %v1877, 5
      %v2474 = vrot.slane %v2473, 4
      %v2475 = vrot.slane %v1878, 5
      %v2476 = vsel %vm834, %v2474, %v2475
      %v2477 = vrot.slane %v2475, 4
      %v2478 = vrot.slane %v1879, 5
      %v2479 = vsel %vm834, %v2477, %v2478
      %v2480 = vrot.slane %v1880, 5
      %v2481 = vrot.slane %v2480, 4
      %v2482 = vrot.slane %v1881, 5
      %v2483 = vsel %vm834, %v2481, %v2482
      %v2484 = vrot.slane %v2482, 4
      %v2485 = vrot.slane %v1882, 5
      %v2486 = vsel %vm834, %v2484, %v2485
      %s2487 = scalar_lea.vmem %s262, 16
      %v2488 = vld [vmem:[%s2487] sm:$0x3]
      %v2489 = vunpack.c.l.b16 %v2434
      %v2490 = vunpack.c.l.b16 %v2437
      %v2491 = vunpack.c.l.b16 %v2441
      %v2492 = vunpack.c.l.b16 %v2444
      %v2493 = vunpack.c.l.b16 %v2448
      %v2494 = vunpack.c.l.b16 %v2451
      %v2495 = vunpack.c.l.b16 %v2455
      %v2496 = vunpack.c.l.b16 %v2458
      %v2497 = vunpack.c.l.b16 %v2462
      %v2498 = vunpack.c.l.b16 %v2465
      %v2499 = vunpack.c.l.b16 %v2469
      %v2500 = vunpack.c.l.b16 %v2472
      %v2501 = vunpack.c.l.b16 %v2476
      %v2502 = vunpack.c.l.b16 %v2479
      %v2503 = vunpack.c.l.b16 %v2483
      %v2504 = vunpack.c.l.b16 %v2486
      %v2505 = vpack.c.b16 %v2490, %v2489
      %v2506 = vpack.c.b16 %v2492, %v2491
      %v2507 = vpack.c.b16 %v2494, %v2493
      %v2508 = vpack.c.b16 %v2496, %v2495
      %v2509 = vpack.c.b16 %v2498, %v2497
      %v2510 = vpack.c.b16 %v2500, %v2499
      %v2511 = vpack.c.b16 %v2502, %v2501
      %v2512 = vpack.c.b16 %v2504, %v2503
      %v2514 = vsel %vm534, %v2505, 0
      %v2517 = vsel %vm534, %v2506, 0
      %v2520 = vsel %vm534, %v2507, 0
      %v2523 = vsel %vm534, %v2508, 0
      %v2526 = vsel %vm534, %v2509, 0
      %v2529 = vsel %vm534, %v2510, 0
      %v2532 = vsel %vm534, %v2511, 0
      %v2535 = vsel %vm534, %v2512, 0
      %v2538 = vsel %vm559, %v2488, 0
      %2540 = vmatprep.subr.bf16.mxu0 0
      %2541 = vmatpush1.bf16.msra.mxu0 %v2538
      %2542 = vmatprep.subr.bf16.mxu0 0
      %2543 = vmatpush1.bf16.msra.mxu0 0
      %2544 = vmatprep.subr.bf16.mxu0 0
      %2545 = vmatpush1.bf16.msra.mxu0 0
      %2546 = vmatprep.subr.bf16.mxu0 0
      %2547 = vmatpush1.bf16.msra.mxu0 0
      %2548 = vmatprep.subr.bf16.mxu0 0
      %2549 = vmatpush1.bf16.msra.mxu0 0
      %2550 = vmatprep.subr.bf16.mxu0 0
      %2551 = vmatpush1.bf16.msra.mxu0 0
      %2552 = vmatprep.subr.bf16.mxu0 0
      %2553 = vmatpush1.bf16.msra.mxu0 0
      %2554 = vmatprep.subr.bf16.mxu0 0
      %2555 = vmatpush1.bf16.msra.mxu0 0
      %2556 = vmatprep.subr.bf16.mxu0 0
      %2557 = vmatpush1.bf16.msra.mxu0 0
      %2558 = vmatprep.subr.bf16.mxu0 0
      %2559 = vmatpush1.bf16.msra.mxu0 0
      %2560 = vmatprep.subr.bf16.mxu0 0
      %2561 = vmatpush1.bf16.msra.mxu0 0
      %2562 = vmatprep.subr.bf16.mxu0 0
      %2563 = vmatpush1.bf16.msra.mxu0 0
      %2564 = vmatprep.subr.bf16.mxu0 0
      %2565 = vmatpush1.bf16.msra.mxu0 0
      %2566 = vmatprep.subr.bf16.mxu0 0
      %2567 = vmatpush1.bf16.msra.mxu0 0
      %2568 = vmatprep.subr.bf16.mxu0 0
      %2569 = vmatpush1.bf16.msra.mxu0 0
      %2570 = vmatprep.subr.bf16.mxu0 0
      %2571 = vmatpush1.bf16.msra.mxu0 0
      %2572 = vmatprep.mubr.bf16.mxu0 0
      %2573 = vmatmul.mubr.bf16.gmra.mrb[0].mxu0 %v2514
      %v2574 = vpop.f32.mrb[0].mxu0
      %v2575 = vadd.f32 0.0, %v2574
      %v2576 = vpop.f32.mrb[0].mxu0
      %v2577 = vpop.f32.mrb[0].mxu0
      %v2578 = vadd.f32 0.0, %v2577
      %v2579 = vpop.f32.mrb[0].mxu0
      %2580 = vmatprep.mubr.bf16.mxu0 0
      %2581 = vmatmul.mubr.bf16.gmra.mrb[0].mxu0 %v2517
      %v2582 = vpop.f32.mrb[0].mxu0
      %v2583 = vadd.f32 0.0, %v2582
      %v2584 = vpop.f32.mrb[0].mxu0
      %v2585 = vpop.f32.mrb[0].mxu0
      %v2586 = vadd.f32 0.0, %v2585
      %v2587 = vpop.f32.mrb[0].mxu0
      %2588 = vmatprep.mubr.bf16.mxu0 0
      %2589 = vmatmul.mubr.bf16.gmra.mrb[0].mxu0 %v2520
      %v2590 = vpop.f32.mrb[0].mxu0
      %v2591 = vadd.f32 0.0, %v2590
      %v2592 = vpop.f32.mrb[0].mxu0
      %v2593 = vpop.f32.mrb[0].mxu0
      %v2594 = vadd.f32 0.0, %v2593
      %v2595 = vpop.f32.mrb[0].mxu0
      %2596 = vmatprep.mubr.bf16.mxu0 0
      %2597 = vmatmul.mubr.bf16.gmra.mrb[0].mxu0 %v2523
      %v2598 = vpop.f32.mrb[0].mxu0
      %v2599 = vadd.f32 0.0, %v2598
      %v2600 = vpop.f32.mrb[0].mxu0
      %v2601 = vpop.f32.mrb[0].mxu0
      %v2602 = vadd.f32 0.0, %v2601
      %v2603 = vpop.f32.mrb[0].mxu0
      %2604 = vmatprep.mubr.bf16.mxu0 0
      %2605 = vmatmul.mubr.bf16.gmra.mrb[0].mxu0 %v2526
      %v2606 = vpop.f32.mrb[0].mxu0
      %v2607 = vadd.f32 0.0, %v2606
      %v2608 = vpop.f32.mrb[0].mxu0
      %v2609 = vpop.f32.mrb[0].mxu0
      %v2610 = vadd.f32 0.0, %v2609
      %v2611 = vpop.f32.mrb[0].mxu0
      %2612 = vmatprep.mubr.bf16.mxu0 0
      %2613 = vmatmul.mubr.bf16.gmra.mrb[0].mxu0 %v2529
      %v2614 = vpop.f32.mrb[0].mxu0
      %v2615 = vadd.f32 0.0, %v2614
      %v2616 = vpop.f32.mrb[0].mxu0
      %v2617 = vpop.f32.mrb[0].mxu0
      %v2618 = vadd.f32 0.0, %v2617
      %v2619 = vpop.f32.mrb[0].mxu0
      %2620 = vmatprep.mubr.bf16.mxu0 0
      %2621 = vmatmul.mubr.bf16.gmra.mrb[0].mxu0 %v2532
      %v2622 = vpop.f32.mrb[0].mxu0
      %v2623 = vadd.f32 0.0, %v2622
      %v2624 = vpop.f32.mrb[0].mxu0
      %v2625 = vpop.f32.mrb[0].mxu0
      %v2626 = vadd.f32 0.0, %v2625
      %v2627 = vpop.f32.mrb[0].mxu0
      %2628 = vmatprep.mubr.bf16.mxu0 0
      %2629 = vmatmul.mubr.bf16.gmra.mrb[0].mxu0 %v2535
      %v2630 = vpop.f32.mrb[0].mxu0
      %v2631 = vadd.f32 0.0, %v2630
      %v2632 = vpop.f32.mrb[0].mxu0
      %v2633 = vpop.f32.mrb[0].mxu0
      %v2634 = vadd.f32 0.0, %v2633
      %v2635 = vpop.f32.mrb[0].mxu0
      %2636 = vdwg.mxu0
      %v2637 = vadd.f32 %v2407, %v2575
      %v2638 = vadd.f32 %v2408, %v2578
      %v2639 = vadd.f32 %v2409, %v2583
      %v2640 = vadd.f32 %v2410, %v2586
      %v2641 = vadd.f32 %v2411, %v2591
      %v2642 = vadd.f32 %v2412, %v2594
      %v2643 = vadd.f32 %v2413, %v2599
      %v2644 = vadd.f32 %v2414, %v2602
      %v2645 = vadd.f32 %v2415, %v2607
      %v2646 = vadd.f32 %v2416, %v2610
      %v2647 = vadd.f32 %v2417, %v2615
      %v2648 = vadd.f32 %v2418, %v2618
      %v2649 = vadd.f32 %v2419, %v2623
      %v2650 = vadd.f32 %v2420, %v2626
      %v2651 = vadd.f32 %v2421, %v2631
      %v2652 = vadd.f32 %v2422, %v2634
      %v2653 = vld [vmem:[%s265] sm:$0x1]
      %v2655 = vlaneseq
      %v2656 = vshrl.u32 %v2655, 7
      %v2657 = vsub.s32 0, %v2656
      %v2658 = vrot.slane %v2653, %v2657
      %v2660 = vmul.f32 %v2637, %v2658
      %v2661 = vmul.f32 %v2638, %v2658
      %v2662 = vmul.f32 %v2639, %v2658
      %v2663 = vmul.f32 %v2640, %v2658
      %v2664 = vmul.f32 %v2641, %v2658
      %v2665 = vmul.f32 %v2642, %v2658
      %v2666 = vmul.f32 %v2643, %v2658
      %v2667 = vmul.f32 %v2644, %v2658
      %v2668 = vmul.f32 %v2645, %v2658
      %v2669 = vmul.f32 %v2646, %v2658
      %v2670 = vmul.f32 %v2647, %v2658
      %v2671 = vmul.f32 %v2648, %v2658
      %v2672 = vmul.f32 %v2649, %v2658
      %v2673 = vmul.f32 %v2650, %v2658
      %v2674 = vmul.f32 %v2651, %v2658
      %v2675 = vmul.f32 %v2652, %v2658
      %v2676 = vld [vmem:[%s268] sm:$0x1]
      %v2678 = vlaneseq
      %v2679 = vshrl.u32 %v2678, 7
      %v2680 = vsub.s32 0, %v2679
      %v2681 = vrot.slane %v2676, %v2680
      %v2683 = vadd.f32 %v2660, %v2681
      %v2684 = vadd.f32 %v2661, %v2681
      %v2685 = vadd.f32 %v2662, %v2681
      %v2686 = vadd.f32 %v2663, %v2681
      %v2687 = vadd.f32 %v2664, %v2681
      %v2688 = vadd.f32 %v2665, %v2681
      %v2689 = vadd.f32 %v2666, %v2681
      %v2690 = vadd.f32 %v2667, %v2681
      %v2691 = vadd.f32 %v2668, %v2681
      %v2692 = vadd.f32 %v2669, %v2681
      %v2693 = vadd.f32 %v2670, %v2681
      %v2694 = vadd.f32 %v2671, %v2681
      %v2695 = vadd.f32 %v2672, %v2681
      %v2696 = vadd.f32 %v2673, %v2681
      %v2697 = vadd.f32 %v2674, %v2681
      %v2698 = vadd.f32 %v2675, %v2681
      %2699 = vst [vmem:[%s281] sm:$0xff] %v2683
      %2700 = vst [vmem:[%s281 + $0x8] sm:$0xff] %v2684
      %2701 = vst [vmem:[%s281 + $0x10] sm:$0xff] %v2685
      %2702 = vst [vmem:[%s281 + $0x18] sm:$0xff] %v2686
      %2703 = vst [vmem:[%s281 + $0x20] sm:$0xff] %v2687
      %2704 = vst [vmem:[%s281 + $0x28] sm:$0xff] %v2688
      %2705 = vst [vmem:[%s281 + $0x30] sm:$0xff] %v2689
      %2706 = vst [vmem:[%s281 + $0x38] sm:$0xff] %v2690
      %2707 = vst [vmem:[%s281 + $0x40] sm:$0xff] %v2691
      %2708 = vst [vmem:[%s281 + $0x48] sm:$0xff] %v2692
      %2709 = vst [vmem:[%s281 + $0x50] sm:$0xff] %v2693
      %2710 = vst [vmem:[%s281 + $0x58] sm:$0xff] %v2694
      %2711 = vst [vmem:[%s281 + $0x60] sm:$0xff] %v2695
      %2712 = vst [vmem:[%s281 + $0x68] sm:$0xff] %v2696
      %2713 = vst [vmem:[%s281 + $0x70] sm:$0xff] %v2697
      %2714 = vst [vmem:[%s281 + $0x78] sm:$0xff] %v2698
      %s2715 = smul.u32 8, %s22
      %p2716 = scmp.lt.s32.totalorder %s20, 1
      %s2717 = scalar_select %p2716, %s20, 1
      %p2718 = scmp.lt.s32.totalorder %s2715, 15
      %s2719 = scalar_select %p2718, %s2715, 15
      %p2720 = scmp.lt.s32.totalorder %s21, 0
      %s2721 = scalar_select %p2720, %s21, 0
      %s2722 = smul.addr %s2719, 2
      %s2723 = sadd.s32 %s2721, %s2722
      %s2724 = smul.addr %s2717, 32
      %s2725 = sadd.s32 %s2723, %s2724
      %s2726 = smul.addr %s2725, 8
      %s2727 = scalar_lea.vmem %s4, %s2726
      // Predicated region
      $region37: #{int_multiprec_conv2d_forward.1} parent=35 // pred_check
        %p2728 = pneg %p160
      $region38: #{int_multiprec_conv2d_forward.1} parent=35 // pred_check_branch
        %2730 = sbr.rel (%p2728) target = $region40
      $region39: #{int_multiprec_conv2d_forward.1} parent=35 // pred_region
        %s2731 = smul.u32 8, %s22
      $region40: #{int_multiprec_conv2d_forward.1} parent=35 // pred_fallthru
        _
    $region36: #{int_multiprec_conv2d_forward.1} parent=5 // pred_fallthru
      _
    %p2732 = scmp.le.s32.totalorder 2, %s10
    // Predicated region
    $region41: #{int_multiprec_conv2d_forward.1} parent=5 // pred_check
      %p2733 = pneg %p2732
    $region42: #{int_multiprec_conv2d_forward.1} parent=5 // pred_check_branch
      %2735 = sbr.rel (%p2733) target = $region44
    $region43: #{int_multiprec_conv2d_forward.1} parent=5 // pred_region
      %s2736 = ssub.s32 %s10, 2
      // Predicated region
      $region45: #{int_multiprec_conv2d_forward.1} parent=43 // pred_check
        %p2737 = pneg %p166
      $region46: #{int_multiprec_conv2d_forward.1} parent=43 // pred_check_branch
        %2739 = sbr.rel (%p2737) target = $region48
      $region47: #{int_multiprec_conv2d_forward.1} parent=43 // pred_region
        %s2740 = smul.u32 8, %s25
        %p2741 = scmp.lt.s32.totalorder %s23, 1
        %s2742 = scalar_select %p2741, %s23, 1
        %p2743 = scmp.lt.s32.totalorder %s2740, 15
        %s2744 = scalar_select %p2743, %s2740, 15
        %p2745 = scmp.lt.s32.totalorder %s24, 0
        %s2746 = scalar_select %p2745, %s24, 0
        %s2747 = smul.addr %s2744, 2
        %s2748 = sadd.s32 %s2746, %s2747
        %s2749 = smul.addr %s2742, 32
        %s2750 = sadd.s32 %s2748, %s2749
        %s2751 = smul.addr %s2750, 8
        %s2752 = scalar_lea.vmem %s4, %s2751
      $region48: #{int_multiprec_conv2d_forward.1} parent=43 // pred_fallthru
        _
    $region44: #{int_multiprec_conv2d_forward.1} parent=5 // pred_fallthru
      _
  $region6: #{int_multiprec_conv2d_forward.1} parent=0 // loop_footer
    %s14 = sadd.s32 1, %s10
  $region7: #{int_multiprec_conv2d_forward.1} parent=0 // loop_footer_branch
    %9 = sbr.rel target = $region3
  $region8: #{int_multiprec_conv2d_forward.1} parent=0 // loop_exit
    _

</llo_original>
